<compile_context>
chip_gen: v7x
topology: tpu7x:2x2x1
jax: 0.10.0
libtpu: 0.0.40
codegen_flags: <defaults>
</compile_context>

<pallas_src>
import math

import jax
import jax.numpy as jnp
from jax.experimental import pallas as pl
from jax.experimental.pallas import tpu as pltpu

# GPT2Configuration (small, synthetic):
B = 2          # batch
S = 8          # sequence length
D = 32         # decoder_dimension
H = 4          # number_of_heads
HD = 8         # head_dimension
EPS = 1e-5
NEG_BIG = -1e9  # finite additive mask bias; exp() underflows it to exactly 0
BS = B * S


def _layernorm(x, gamma, beta):
    # One-pass LN: var = E[x^2] - mu^2; gamma folded into the rsqrt scale.
    mu = jnp.mean(x, axis=-1, keepdims=True)
    msq = jnp.mean(x * x, axis=-1, keepdims=True)
    inv = jax.lax.rsqrt(msq - mu * mu + EPS)
    return (x - mu) * (inv * gamma) + beta


def decoder_kernel(x_ref, bias_ref,
                   wq_ref, wk_ref, wvo_ref,
                   w0_ref, b0_ref, w1_ref, b1_ref,
                   g0_ref, be0_ref, g1_ref, be1_ref,
                   out_ref):
    x2 = x_ref[...].reshape(BS, D).astype(jnp.float32)     # fold batch into sublanes
    bias = bias_ref[...]                                   # (BS, BS) block-diag causal

    # Fused full-width projections (one MXU call each):
    #   q_all already scaled by 1/sqrt(HD); wvo = per-head (Wv @ Wo) stacked on lanes.
    q_all = jnp.dot(x2, wq_ref[...], preferred_element_type=jnp.float32)    # (BS, H*HD)
    k_all = jnp.dot(x2, wk_ref[...], preferred_element_type=jnp.float32)    # (BS, H*HD)
    v_all = jnp.dot(x2, wvo_ref[...], preferred_element_type=jnp.float32)   # (BS, H*D)

    acc = jnp.zeros((BS, D), jnp.float32)
    for h in range(H):                                     # static unroll, H = 4
        qh = q_all[:, h * HD:(h + 1) * HD]                 # static lane slices (XLU slot)
        kh = k_all[:, h * HD:(h + 1) * HD]
        vh = v_all[:, h * D:(h + 1) * D]                   # (BS, D) value already in D-space

        # score = (q/sqrt(HD)) @ k^T with batch folded: one (BS,HD)x(HD,BS) matmul.
        score = jax.lax.dot_general(qh, kh, (((1,), (1,)), ((), ())),
                                    preferred_element_type=jnp.float32)     # (BS, BS)
        score = score + bias
        score = score - jnp.max(score, axis=-1, keepdims=True)
        p = jnp.exp(score)
        s = jnp.sum(p, axis=-1, keepdims=True)
        r = pl.reciprocal(s, approx=True)                  # EUP slot
        r = r * (2.0 - s * r)                              # one Newton step, ~1e-7 rel err
        p = p * r

        # W_o is already folded into vh -> accumulate straight into D-space.
        acc = acc + jnp.dot(p, vh, preferred_element_type=jnp.float32)      # (BS, D)

    # residual + layernorm 0
    x1 = _layernorm(x2 + acc, g0_ref[...], be0_ref[...])

    # --- MLP ---
    hdn = jnp.dot(x1, w0_ref[...], preferred_element_type=jnp.float32) + b0_ref[...]
    hdn = jnp.maximum(hdn, 0.0)
    mlp = jnp.dot(hdn, w1_ref[...], preferred_element_type=jnp.float32) + b1_ref[...]

    # residual + layernorm 1
    out = _layernorm(x1 + mlp, g1_ref[...], be1_ref[...])
    out_ref[...] = out.reshape(B, S, D).astype(out_ref.dtype)


def gpt2_decoder(x, mask, params):
    (wq, wk, wv, wo, w0, b0, w1, b1, g0, be0, g1, be1) = params

    # Static weight transforms (one-time, outside the kernel):
    wq_s = wq * jnp.float32(1.0 / math.sqrt(HD))                       # (D, H*HD)
    wv_h = jnp.transpose(wv.reshape(D, H, HD), (1, 0, 2))              # (H, D, HD)
    wo_h = wo.reshape(H, HD, D)                                        # (H, HD, D)
    wvo = jnp.einsum("hdk,hke->hde", wv_h, wo_h)                       # (H, D, D)
    wvo = jnp.transpose(wvo, (1, 0, 2)).reshape(D, H * D)              # (D, H*D)

    # Mask -> (B*S, B*S) additive f32 bias: causal inside each diagonal SxS block,
    # NEG_BIG across batch blocks (those probabilities underflow to exactly 0).
    causal = jnp.where(mask == 0, jnp.float32(NEG_BIG), jnp.float32(0.0))    # (S, S)
    blk = jnp.arange(BS) // S
    same_batch = blk[:, None] == blk[None, :]
    bias = jnp.where(same_batch, jnp.tile(causal, (B, B)), jnp.float32(NEG_BIG))

    full = lambda shape: pl.BlockSpec(shape, lambda i: (0,) * len(shape))

    return pl.pallas_call(
        decoder_kernel,
        out_shape=jax.ShapeDtypeStruct((B, S, D), jnp.float32),
        grid=(1,),      # single step: whole problem (~0.15 MiB) stays VMEM-resident
        in_specs=[
            full((B, S, D)),                       # x
            full((BS, BS)),                        # additive mask bias
            full((D, H * HD)), full((D, H * HD)),  # wq (pre-scaled), wk
            full((D, H * D)),                      # wvo (= per-head Wv @ Wo, stacked)
            full((D, 4 * D)), full((1, 4 * D)),    # w0, b0
            full((4 * D, D)), full((1, D)),        # w1, b1
            full((1, D)), full((1, D)),            # ln0 gamma/beta
            full((1, D)), full((1, D)),            # ln1 gamma/beta
        ],
        out_specs=full((B, S, D)),
        compiler_params=pltpu.CompilerParams(dimension_semantics=("arbitrary",)),
    )(x, bias, wq_s, wk, wvo, w0, b0, w1, b1, g0, be0, g1, be1)


def reference(x, mask, params):
    (wq, wk, wv, wo, w0, b0, w1, b1, g0, be0, g1, be1) = params

    def ln(v, gamma, beta):                       # two-pass LN, like torch LayerNorm
        mu = jnp.mean(v, axis=-1, keepdims=True)
        var = jnp.mean((v - mu) ** 2, axis=-1, keepdims=True)
        return (v - mu) * jax.lax.rsqrt(var + EPS) * gamma + beta

    q = x @ wq
    k = x @ wk
    v = x @ wv
    outs = []
    for h in range(H):
        qh = q[..., h * HD:(h + 1) * HD]
        kh = k[..., h * HD:(h + 1) * HD]
        vh = v[..., h * HD:(h + 1) * HD]
        sc = jnp.einsum("bqd,bkd->bqk", qh, kh) / math.sqrt(HD)
        sc = jnp.where(mask[None] == 0, -jnp.inf, sc)
        p = jax.nn.softmax(sc, axis=-1)
        outs.append(jnp.einsum("bqk,bkd->bqd", p, vh))
    attn = jnp.concatenate(outs, axis=-1) @ wo
    x1 = ln(x + attn, g0, be0)
    mlp = jnp.maximum(x1 @ w0 + b0, 0.0) @ w1 + b1
    return ln(x1 + mlp, g1, be1)


if __name__ == "__main__":
    key = jax.random.PRNGKey(0)
    ks = jax.random.split(key, 10)

    scale = 0.1
    wq = scale * jax.random.normal(ks[0], (D, H * HD), jnp.float32)
    wk = scale * jax.random.normal(ks[1], (D, H * HD), jnp.float32)
    wv = scale * jax.random.normal(ks[2], (D, H * HD), jnp.float32)
    wo = scale * jax.random.normal(ks[3], (H * HD, D), jnp.float32)
    w0 = scale * jax.random.normal(ks[4], (D, 4 * D), jnp.float32)
    b0 = scale * jax.random.normal(ks[5], (1, 4 * D), jnp.float32)
    w1 = scale * jax.random.normal(ks[6], (4 * D, D), jnp.float32)
    b1 = scale * jax.random.normal(ks[7], (1, D), jnp.float32)
    g0 = jnp.ones((1, D), jnp.float32)
    be0 = jnp.zeros((1, D), jnp.float32)
    g1 = jnp.ones((1, D), jnp.float32)
    be1 = jnp.zeros((1, D), jnp.float32)
    params = (wq, wk, wv, wo, w0, b0, w1, b1, g0, be0, g1, be1)

    x = jax.random.normal(ks[8], (B, S, D), jnp.float32)
    # causal mask (lower triangular), broadcast over batch/heads like the torch module
    mask = jnp.tril(jnp.ones((S, S), jnp.int32))

    out = jax.block_until_ready(gpt2_decoder(x, mask, params))
    ref = reference(x, mask, params)
    assert out.shape == (B, S, D)
    err = float(jnp.max(jnp.abs(out - ref)))
    assert jnp.allclose(out, ref, atol=1e-4, rtol=1e-4), err
    print("KERNEL_OK")
</pallas_src>

<mosaic_0001>
module attributes {stable_mosaic.version = 11 : i64} {
  func.func @decoder_kernel(%arg0: i32, %arg1: memref<2x8x32xf32, #tpu.memory_space<vmem>>, %arg2: memref<16x16xf32, #tpu.memory_space<vmem>>, %arg3: memref<32x32xf32, #tpu.memory_space<vmem>>, %arg4: memref<32x32xf32, #tpu.memory_space<vmem>>, %arg5: memref<32x128xf32, #tpu.memory_space<vmem>>, %arg6: memref<32x128xf32, #tpu.memory_space<vmem>>, %arg7: memref<1x128xf32, #tpu.memory_space<vmem>>, %arg8: memref<128x32xf32, #tpu.memory_space<vmem>>, %arg9: memref<1x32xf32, #tpu.memory_space<vmem>>, %arg10: memref<1x32xf32, #tpu.memory_space<vmem>>, %arg11: memref<1x32xf32, #tpu.memory_space<vmem>>, %arg12: memref<1x32xf32, #tpu.memory_space<vmem>>, %arg13: memref<1x32xf32, #tpu.memory_space<vmem>>, %arg14: memref<2x8x32xf32, #tpu.memory_space<vmem>>) attributes {dimension_semantics = [#tpu.dimension_semantics<arbitrary>], iteration_bounds = array<i64: 1>, scalar_prefetch = 0 : i64, scratch_operands = 0 : i64, tpu.core_type = #tpu.core_type<tc>, window_params = [{pipeline_mode = #tpu.pipeline_mode<synchronous>, transform_indices = @transform_0, window_bounds = array<i64: 2, 8, 32>}, {pipeline_mode = #tpu.pipeline_mode<synchronous>, transform_indices = @transform_1, window_bounds = array<i64: 16, 16>}, {pipeline_mode = #tpu.pipeline_mode<synchronous>, transform_indices = @transform_2, window_bounds = array<i64: 32, 32>}, {pipeline_mode = #tpu.pipeline_mode<synchronous>, transform_indices = @transform_3, window_bounds = array<i64: 32, 32>}, {pipeline_mode = #tpu.pipeline_mode<synchronous>, transform_indices = @transform_4, window_bounds = array<i64: 32, 128>}, {pipeline_mode = #tpu.pipeline_mode<synchronous>, transform_indices = @transform_5, window_bounds = array<i64: 32, 128>}, {pipeline_mode = #tpu.pipeline_mode<synchronous>, transform_indices = @transform_6, window_bounds = array<i64: 1, 128>}, {pipeline_mode = #tpu.pipeline_mode<synchronous>, transform_indices = @transform_7, window_bounds = array<i64: 128, 32>}, {pipeline_mode = #tpu.pipeline_mode<synchronous>, transform_indices = @transform_8, window_bounds = array<i64: 1, 32>}, {pipeline_mode = #tpu.pipeline_mode<synchronous>, transform_indices = @transform_9, window_bounds = array<i64: 1, 32>}, {pipeline_mode = #tpu.pipeline_mode<synchronous>, transform_indices = @transform_10, window_bounds = array<i64: 1, 32>}, {pipeline_mode = #tpu.pipeline_mode<synchronous>, transform_indices = @transform_11, window_bounds = array<i64: 1, 32>}, {pipeline_mode = #tpu.pipeline_mode<synchronous>, transform_indices = @transform_12, window_bounds = array<i64: 1, 32>}, {pipeline_mode = #tpu.pipeline_mode<synchronous>, transform_indices = @transform_13, window_bounds = array<i64: 2, 8, 32>}]} {
    %c0 = arith.constant 0 : index
    %c0_0 = arith.constant 0 : index
    %c0_1 = arith.constant 0 : index
    %0 = vector.load %arg1[%c0, %c0_0, %c0_1] : memref<2x8x32xf32, #tpu.memory_space<vmem>>, vector<2x8x32xf32>
    %1 = vector.shape_cast %0 : vector<2x8x32xf32> to vector<16x32xf32>
    %c0_2 = arith.constant 0 : index
    %c0_3 = arith.constant 0 : index
    %2 = vector.load %arg2[%c0_2, %c0_3] : memref<16x16xf32, #tpu.memory_space<vmem>>, vector<16x16xf32>
    %c0_4 = arith.constant 0 : index
    %c0_5 = arith.constant 0 : index
    %3 = vector.load %arg3[%c0_4, %c0_5] : memref<32x32xf32, #tpu.memory_space<vmem>>, vector<32x32xf32>
    %cst = arith.constant dense<0.000000e+00> : vector<16x32xf32>
    %4 = tpu.matmul %1, %3, %cst {dimension_numbers = #tpu.dot_dimension_numbers<[1], [0], [0], [1], [0, 0, 1, 1], [], []>} : vector<16x32xf32>, vector<32x32xf32>, vector<16x32xf32> -> vector<16x32xf32>
    %c0_6 = arith.constant 0 : index
    %c0_7 = arith.constant 0 : index
    %5 = vector.load %arg4[%c0_6, %c0_7] : memref<32x32xf32, #tpu.memory_space<vmem>>, vector<32x32xf32>
    %cst_8 = arith.constant dense<0.000000e+00> : vector<16x32xf32>
    %6 = tpu.matmul %1, %5, %cst_8 {dimension_numbers = #tpu.dot_dimension_numbers<[1], [0], [0], [1], [0, 0, 1, 1], [], []>} : vector<16x32xf32>, vector<32x32xf32>, vector<16x32xf32> -> vector<16x32xf32>
    %c0_9 = arith.constant 0 : index
    %c0_10 = arith.constant 0 : index
    %7 = vector.load %arg5[%c0_9, %c0_10] : memref<32x128xf32, #tpu.memory_space<vmem>>, vector<32x128xf32>
    %cst_11 = arith.constant dense<0.000000e+00> : vector<16x128xf32>
    %8 = tpu.matmul %1, %7, %cst_11 {dimension_numbers = #tpu.dot_dimension_numbers<[1], [0], [0], [1], [0, 0, 1, 1], [], []>} : vector<16x32xf32>, vector<32x128xf32>, vector<16x128xf32> -> vector<16x128xf32>
    %cst_12 = arith.constant 0.000000e+00 : f32
    %9 = vector.broadcast %cst_12 : f32 to vector<16x32xf32>
    %10 = vector.extract_strided_slice %4 {offsets = [0, 0], sizes = [16, 8], strides = [1, 1]} : vector<16x32xf32> to vector<16x8xf32>
    %11 = vector.extract_strided_slice %6 {offsets = [0, 0], sizes = [16, 8], strides = [1, 1]} : vector<16x32xf32> to vector<16x8xf32>
    %12 = vector.extract_strided_slice %8 {offsets = [0, 0], sizes = [16, 32], strides = [1, 1]} : vector<16x128xf32> to vector<16x32xf32>
    %cst_13 = arith.constant dense<0.000000e+00> : vector<16x16xf32>
    %13 = tpu.matmul %10, %11, %cst_13 {dimension_numbers = #tpu.dot_dimension_numbers<[1], [1], [0], [0], [0, 0, 1, 0], [], []>} : vector<16x8xf32>, vector<16x8xf32>, vector<16x16xf32> -> vector<16x16xf32>
    %14 = arith.addf %13, %2 : vector<16x16xf32>
    %cst_14 = arith.constant dense<0xFF800000> : vector<16xf32>
    %15 = vector.multi_reduction <maximumf>, %14, %cst_14 [1] : vector<16x16xf32> to vector<16xf32>
    %16 = vector.shape_cast %15 : vector<16xf32> to vector<16x1xf32>
    %17 = vector.broadcast %16 : vector<16x1xf32> to vector<16x16xf32>
    %18 = arith.subf %14, %17 : vector<16x16xf32>
    %19 = math.exp %18 : vector<16x16xf32>
    %cst_15 = arith.constant dense<0.000000e+00> : vector<16xf32>
    %20 = vector.multi_reduction <add>, %19, %cst_15 [1] : vector<16x16xf32> to vector<16xf32>
    %21 = vector.shape_cast %20 : vector<16xf32> to vector<16x1xf32>
    %22 = tpu.reciprocal %21 {approx = true} : vector<16x1xf32> -> vector<16x1xf32>
    %23 = arith.mulf %21, %22 : vector<16x1xf32>
    %cst_16 = arith.constant 2.000000e+00 : f32
    %24 = vector.broadcast %cst_16 : f32 to vector<16x1xf32>
    %25 = arith.subf %24, %23 : vector<16x1xf32>
    %26 = arith.mulf %22, %25 : vector<16x1xf32>
    %27 = vector.broadcast %26 : vector<16x1xf32> to vector<16x16xf32>
    %28 = arith.mulf %19, %27 : vector<16x16xf32>
    %cst_17 = arith.constant dense<0.000000e+00> : vector<16x32xf32>
    %29 = tpu.matmul %28, %12, %cst_17 {dimension_numbers = #tpu.dot_dimension_numbers<[1], [0], [0], [1], [0, 0, 1, 1], [], []>} : vector<16x16xf32>, vector<16x32xf32>, vector<16x32xf32> -> vector<16x32xf32>
    %30 = arith.addf %9, %29 : vector<16x32xf32>
    %31 = vector.extract_strided_slice %4 {offsets = [0, 8], sizes = [16, 8], strides = [1, 1]} : vector<16x32xf32> to vector<16x8xf32>
    %32 = vector.extract_strided_slice %6 {offsets = [0, 8], sizes = [16, 8], strides = [1, 1]} : vector<16x32xf32> to vector<16x8xf32>
    %33 = vector.extract_strided_slice %8 {offsets = [0, 32], sizes = [16, 32], strides = [1, 1]} : vector<16x128xf32> to vector<16x32xf32>
    %cst_18 = arith.constant dense<0.000000e+00> : vector<16x16xf32>
    %34 = tpu.matmul %31, %32, %cst_18 {dimension_numbers = #tpu.dot_dimension_numbers<[1], [1], [0], [0], [0, 0, 1, 0], [], []>} : vector<16x8xf32>, vector<16x8xf32>, vector<16x16xf32> -> vector<16x16xf32>
    %35 = arith.addf %34, %2 : vector<16x16xf32>
    %cst_19 = arith.constant dense<0xFF800000> : vector<16xf32>
    %36 = vector.multi_reduction <maximumf>, %35, %cst_19 [1] : vector<16x16xf32> to vector<16xf32>
    %37 = vector.shape_cast %36 : vector<16xf32> to vector<16x1xf32>
    %38 = vector.broadcast %37 : vector<16x1xf32> to vector<16x16xf32>
    %39 = arith.subf %35, %38 : vector<16x16xf32>
    %40 = math.exp %39 : vector<16x16xf32>
    %cst_20 = arith.constant dense<0.000000e+00> : vector<16xf32>
    %41 = vector.multi_reduction <add>, %40, %cst_20 [1] : vector<16x16xf32> to vector<16xf32>
    %42 = vector.shape_cast %41 : vector<16xf32> to vector<16x1xf32>
    %43 = tpu.reciprocal %42 {approx = true} : vector<16x1xf32> -> vector<16x1xf32>
    %44 = arith.mulf %42, %43 : vector<16x1xf32>
    %cst_21 = arith.constant 2.000000e+00 : f32
    %45 = vector.broadcast %cst_21 : f32 to vector<16x1xf32>
    %46 = arith.subf %45, %44 : vector<16x1xf32>
    %47 = arith.mulf %43, %46 : vector<16x1xf32>
    %48 = vector.broadcast %47 : vector<16x1xf32> to vector<16x16xf32>
    %49 = arith.mulf %40, %48 : vector<16x16xf32>
    %cst_22 = arith.constant dense<0.000000e+00> : vector<16x32xf32>
    %50 = tpu.matmul %49, %33, %cst_22 {dimension_numbers = #tpu.dot_dimension_numbers<[1], [0], [0], [1], [0, 0, 1, 1], [], []>} : vector<16x16xf32>, vector<16x32xf32>, vector<16x32xf32> -> vector<16x32xf32>
    %51 = arith.addf %30, %50 : vector<16x32xf32>
    %52 = vector.extract_strided_slice %4 {offsets = [0, 16], sizes = [16, 8], strides = [1, 1]} : vector<16x32xf32> to vector<16x8xf32>
    %53 = vector.extract_strided_slice %6 {offsets = [0, 16], sizes = [16, 8], strides = [1, 1]} : vector<16x32xf32> to vector<16x8xf32>
    %54 = vector.extract_strided_slice %8 {offsets = [0, 64], sizes = [16, 32], strides = [1, 1]} : vector<16x128xf32> to vector<16x32xf32>
    %cst_23 = arith.constant dense<0.000000e+00> : vector<16x16xf32>
    %55 = tpu.matmul %52, %53, %cst_23 {dimension_numbers = #tpu.dot_dimension_numbers<[1], [1], [0], [0], [0, 0, 1, 0], [], []>} : vector<16x8xf32>, vector<16x8xf32>, vector<16x16xf32> -> vector<16x16xf32>
    %56 = arith.addf %55, %2 : vector<16x16xf32>
    %cst_24 = arith.constant dense<0xFF800000> : vector<16xf32>
    %57 = vector.multi_reduction <maximumf>, %56, %cst_24 [1] : vector<16x16xf32> to vector<16xf32>
    %58 = vector.shape_cast %57 : vector<16xf32> to vector<16x1xf32>
    %59 = vector.broadcast %58 : vector<16x1xf32> to vector<16x16xf32>
    %60 = arith.subf %56, %59 : vector<16x16xf32>
    %61 = math.exp %60 : vector<16x16xf32>
    %cst_25 = arith.constant dense<0.000000e+00> : vector<16xf32>
    %62 = vector.multi_reduction <add>, %61, %cst_25 [1] : vector<16x16xf32> to vector<16xf32>
    %63 = vector.shape_cast %62 : vector<16xf32> to vector<16x1xf32>
    %64 = tpu.reciprocal %63 {approx = true} : vector<16x1xf32> -> vector<16x1xf32>
    %65 = arith.mulf %63, %64 : vector<16x1xf32>
    %cst_26 = arith.constant 2.000000e+00 : f32
    %66 = vector.broadcast %cst_26 : f32 to vector<16x1xf32>
    %67 = arith.subf %66, %65 : vector<16x1xf32>
    %68 = arith.mulf %64, %67 : vector<16x1xf32>
    %69 = vector.broadcast %68 : vector<16x1xf32> to vector<16x16xf32>
    %70 = arith.mulf %61, %69 : vector<16x16xf32>
    %cst_27 = arith.constant dense<0.000000e+00> : vector<16x32xf32>
    %71 = tpu.matmul %70, %54, %cst_27 {dimension_numbers = #tpu.dot_dimension_numbers<[1], [0], [0], [1], [0, 0, 1, 1], [], []>} : vector<16x16xf32>, vector<16x32xf32>, vector<16x32xf32> -> vector<16x32xf32>
    %72 = arith.addf %51, %71 : vector<16x32xf32>
    %73 = vector.extract_strided_slice %4 {offsets = [0, 24], sizes = [16, 8], strides = [1, 1]} : vector<16x32xf32> to vector<16x8xf32>
    %74 = vector.extract_strided_slice %6 {offsets = [0, 24], sizes = [16, 8], strides = [1, 1]} : vector<16x32xf32> to vector<16x8xf32>
    %75 = vector.extract_strided_slice %8 {offsets = [0, 96], sizes = [16, 32], strides = [1, 1]} : vector<16x128xf32> to vector<16x32xf32>
    %cst_28 = arith.constant dense<0.000000e+00> : vector<16x16xf32>
    %76 = tpu.matmul %73, %74, %cst_28 {dimension_numbers = #tpu.dot_dimension_numbers<[1], [1], [0], [0], [0, 0, 1, 0], [], []>} : vector<16x8xf32>, vector<16x8xf32>, vector<16x16xf32> -> vector<16x16xf32>
    %77 = arith.addf %76, %2 : vector<16x16xf32>
    %cst_29 = arith.constant dense<0xFF800000> : vector<16xf32>
    %78 = vector.multi_reduction <maximumf>, %77, %cst_29 [1] : vector<16x16xf32> to vector<16xf32>
    %79 = vector.shape_cast %78 : vector<16xf32> to vector<16x1xf32>
    %80 = vector.broadcast %79 : vector<16x1xf32> to vector<16x16xf32>
    %81 = arith.subf %77, %80 : vector<16x16xf32>
    %82 = math.exp %81 : vector<16x16xf32>
    %cst_30 = arith.constant dense<0.000000e+00> : vector<16xf32>
    %83 = vector.multi_reduction <add>, %82, %cst_30 [1] : vector<16x16xf32> to vector<16xf32>
    %84 = vector.shape_cast %83 : vector<16xf32> to vector<16x1xf32>
    %85 = tpu.reciprocal %84 {approx = true} : vector<16x1xf32> -> vector<16x1xf32>
    %86 = arith.mulf %84, %85 : vector<16x1xf32>
    %cst_31 = arith.constant 2.000000e+00 : f32
    %87 = vector.broadcast %cst_31 : f32 to vector<16x1xf32>
    %88 = arith.subf %87, %86 : vector<16x1xf32>
    %89 = arith.mulf %85, %88 : vector<16x1xf32>
    %90 = vector.broadcast %89 : vector<16x1xf32> to vector<16x16xf32>
    %91 = arith.mulf %82, %90 : vector<16x16xf32>
    %cst_32 = arith.constant dense<0.000000e+00> : vector<16x32xf32>
    %92 = tpu.matmul %91, %75, %cst_32 {dimension_numbers = #tpu.dot_dimension_numbers<[1], [0], [0], [1], [0, 0, 1, 1], [], []>} : vector<16x16xf32>, vector<16x32xf32>, vector<16x32xf32> -> vector<16x32xf32>
    %93 = arith.addf %72, %92 : vector<16x32xf32>
    %94 = arith.addf %1, %93 : vector<16x32xf32>
    %c0_33 = arith.constant 0 : index
    %c0_34 = arith.constant 0 : index
    %95 = vector.load %arg10[%c0_33, %c0_34] : memref<1x32xf32, #tpu.memory_space<vmem>>, vector<1x32xf32>
    %c0_35 = arith.constant 0 : index
    %c0_36 = arith.constant 0 : index
    %96 = vector.load %arg11[%c0_35, %c0_36] : memref<1x32xf32, #tpu.memory_space<vmem>>, vector<1x32xf32>
    %cst_37 = arith.constant dense<0.000000e+00> : vector<16xf32>
    %97 = vector.multi_reduction <add>, %94, %cst_37 [1] : vector<16x32xf32> to vector<16xf32>
    %98 = vector.shape_cast %97 : vector<16xf32> to vector<16x1xf32>
    %cst_38 = arith.constant 3.200000e+01 : f32
    %99 = vector.broadcast %cst_38 : f32 to vector<16x1xf32>
    %100 = arith.divf %98, %99 : vector<16x1xf32>
    %101 = arith.mulf %94, %94 : vector<16x32xf32>
    %cst_39 = arith.constant dense<0.000000e+00> : vector<16xf32>
    %102 = vector.multi_reduction <add>, %101, %cst_39 [1] : vector<16x32xf32> to vector<16xf32>
    %103 = vector.shape_cast %102 : vector<16xf32> to vector<16x1xf32>
    %cst_40 = arith.constant 3.200000e+01 : f32
    %104 = vector.broadcast %cst_40 : f32 to vector<16x1xf32>
    %105 = arith.divf %103, %104 : vector<16x1xf32>
    %106 = arith.mulf %100, %100 : vector<16x1xf32>
    %107 = arith.subf %105, %106 : vector<16x1xf32>
    %cst_41 = arith.constant 9.99999974E-6 : f32
    %108 = vector.broadcast %cst_41 : f32 to vector<16x1xf32>
    %109 = arith.addf %107, %108 : vector<16x1xf32>
    %110 = math.rsqrt %109 : vector<16x1xf32>
    %111 = vector.broadcast %100 : vector<16x1xf32> to vector<16x32xf32>
    %112 = arith.subf %94, %111 : vector<16x32xf32>
    %113 = vector.broadcast %110 : vector<16x1xf32> to vector<16x32xf32>
    %114 = vector.broadcast %95 : vector<1x32xf32> to vector<16x32xf32>
    %115 = arith.mulf %113, %114 : vector<16x32xf32>
    %116 = arith.mulf %112, %115 : vector<16x32xf32>
    %117 = vector.broadcast %96 : vector<1x32xf32> to vector<16x32xf32>
    %118 = arith.addf %116, %117 : vector<16x32xf32>
    %c0_42 = arith.constant 0 : index
    %c0_43 = arith.constant 0 : index
    %119 = vector.load %arg6[%c0_42, %c0_43] : memref<32x128xf32, #tpu.memory_space<vmem>>, vector<32x128xf32>
    %cst_44 = arith.constant dense<0.000000e+00> : vector<16x128xf32>
    %120 = tpu.matmul %118, %119, %cst_44 {dimension_numbers = #tpu.dot_dimension_numbers<[1], [0], [0], [1], [0, 0, 1, 1], [], []>} : vector<16x32xf32>, vector<32x128xf32>, vector<16x128xf32> -> vector<16x128xf32>
    %c0_45 = arith.constant 0 : index
    %c0_46 = arith.constant 0 : index
    %121 = vector.load %arg7[%c0_45, %c0_46] : memref<1x128xf32, #tpu.memory_space<vmem>>, vector<1x128xf32>
    %122 = vector.broadcast %121 : vector<1x128xf32> to vector<16x128xf32>
    %123 = arith.addf %120, %122 : vector<16x128xf32>
    %cst_47 = arith.constant 0.000000e+00 : f32
    %124 = vector.broadcast %cst_47 : f32 to vector<16x128xf32>
    %125 = arith.maximumf %123, %124 : vector<16x128xf32>
    %c0_48 = arith.constant 0 : index
    %c0_49 = arith.constant 0 : index
    %126 = vector.load %arg8[%c0_48, %c0_49] : memref<128x32xf32, #tpu.memory_space<vmem>>, vector<128x32xf32>
    %cst_50 = arith.constant dense<0.000000e+00> : vector<16x32xf32>
    %127 = tpu.matmul %125, %126, %cst_50 {dimension_numbers = #tpu.dot_dimension_numbers<[1], [0], [0], [1], [0, 0, 1, 1], [], []>} : vector<16x128xf32>, vector<128x32xf32>, vector<16x32xf32> -> vector<16x32xf32>
    %c0_51 = arith.constant 0 : index
    %c0_52 = arith.constant 0 : index
    %128 = vector.load %arg9[%c0_51, %c0_52] : memref<1x32xf32, #tpu.memory_space<vmem>>, vector<1x32xf32>
    %129 = vector.broadcast %128 : vector<1x32xf32> to vector<16x32xf32>
    %130 = arith.addf %127, %129 : vector<16x32xf32>
    %131 = arith.addf %118, %130 : vector<16x32xf32>
    %c0_53 = arith.constant 0 : index
    %c0_54 = arith.constant 0 : index
    %132 = vector.load %arg12[%c0_53, %c0_54] : memref<1x32xf32, #tpu.memory_space<vmem>>, vector<1x32xf32>
    %c0_55 = arith.constant 0 : index
    %c0_56 = arith.constant 0 : index
    %133 = vector.load %arg13[%c0_55, %c0_56] : memref<1x32xf32, #tpu.memory_space<vmem>>, vector<1x32xf32>
    %cst_57 = arith.constant dense<0.000000e+00> : vector<16xf32>
    %134 = vector.multi_reduction <add>, %131, %cst_57 [1] : vector<16x32xf32> to vector<16xf32>
    %135 = vector.shape_cast %134 : vector<16xf32> to vector<16x1xf32>
    %cst_58 = arith.constant 3.200000e+01 : f32
    %136 = vector.broadcast %cst_58 : f32 to vector<16x1xf32>
    %137 = arith.divf %135, %136 : vector<16x1xf32>
    %138 = arith.mulf %131, %131 : vector<16x32xf32>
    %cst_59 = arith.constant dense<0.000000e+00> : vector<16xf32>
    %139 = vector.multi_reduction <add>, %138, %cst_59 [1] : vector<16x32xf32> to vector<16xf32>
    %140 = vector.shape_cast %139 : vector<16xf32> to vector<16x1xf32>
    %cst_60 = arith.constant 3.200000e+01 : f32
    %141 = vector.broadcast %cst_60 : f32 to vector<16x1xf32>
    %142 = arith.divf %140, %141 : vector<16x1xf32>
    %143 = arith.mulf %137, %137 : vector<16x1xf32>
    %144 = arith.subf %142, %143 : vector<16x1xf32>
    %cst_61 = arith.constant 9.99999974E-6 : f32
    %145 = vector.broadcast %cst_61 : f32 to vector<16x1xf32>
    %146 = arith.addf %144, %145 : vector<16x1xf32>
    %147 = math.rsqrt %146 : vector<16x1xf32>
    %148 = vector.broadcast %137 : vector<16x1xf32> to vector<16x32xf32>
    %149 = arith.subf %131, %148 : vector<16x32xf32>
    %150 = vector.broadcast %147 : vector<16x1xf32> to vector<16x32xf32>
    %151 = vector.broadcast %132 : vector<1x32xf32> to vector<16x32xf32>
    %152 = arith.mulf %150, %151 : vector<16x32xf32>
    %153 = arith.mulf %149, %152 : vector<16x32xf32>
    %154 = vector.broadcast %133 : vector<1x32xf32> to vector<16x32xf32>
    %155 = arith.addf %153, %154 : vector<16x32xf32>
    %156 = vector.shape_cast %155 : vector<16x32xf32> to vector<2x8x32xf32>
    %c0_62 = arith.constant 0 : index
    %c0_63 = arith.constant 0 : index
    %c0_64 = arith.constant 0 : index
    %157 = vector.load %arg14[%c0_62, %c0_63, %c0_64] : memref<2x8x32xf32, #tpu.memory_space<vmem>>, vector<2x8x32xf32>
    tpu.vector_store %arg14[%c0_62, %c0_63, %c0_64], %156 {strides = array<i32>} : memref<2x8x32xf32, #tpu.memory_space<vmem>>, vector<2x8x32xf32>,
    return
  }
  func.func @transform_0(%arg0: i32) -> (i32, i32, i32) {
    %c0_i32 = arith.constant 0 : i32
    %c0_i32_0 = arith.constant 0 : i32
    %c0_i32_1 = arith.constant 0 : i32
    %c0_i32_2 = arith.constant 0 : i32
    return %c0_i32, %c0_i32_0, %c0_i32_1 : i32, i32, i32
  }
  func.func @transform_1(%arg0: i32) -> (i32, i32) {
    %c0_i32 = arith.constant 0 : i32
    %c0_i32_0 = arith.constant 0 : i32
    %c0_i32_1 = arith.constant 0 : i32
    return %c0_i32, %c0_i32_0 : i32, i32
  }
  func.func @transform_2(%arg0: i32) -> (i32, i32) {
    %c0_i32 = arith.constant 0 : i32
    %c0_i32_0 = arith.constant 0 : i32
    %c0_i32_1 = arith.constant 0 : i32
    return %c0_i32, %c0_i32_0 : i32, i32
  }
  func.func @transform_3(%arg0: i32) -> (i32, i32) {
    %c0_i32 = arith.constant 0 : i32
    %c0_i32_0 = arith.constant 0 : i32
    %c0_i32_1 = arith.constant 0 : i32
    return %c0_i32, %c0_i32_0 : i32, i32
  }
  func.func @transform_4(%arg0: i32) -> (i32, i32) {
    %c0_i32 = arith.constant 0 : i32
    %c0_i32_0 = arith.constant 0 : i32
    %c0_i32_1 = arith.constant 0 : i32
    return %c0_i32, %c0_i32_0 : i32, i32
  }
  func.func @transform_5(%arg0: i32) -> (i32, i32) {
    %c0_i32 = arith.constant 0 : i32
    %c0_i32_0 = arith.constant 0 : i32
    %c0_i32_1 = arith.constant 0 : i32
    return %c0_i32, %c0_i32_0 : i32, i32
  }
  func.func @transform_6(%arg0: i32) -> (i32, i32) {
    %c0_i32 = arith.constant 0 : i32
    %c0_i32_0 = arith.constant 0 : i32
    %c0_i32_1 = arith.constant 0 : i32
    return %c0_i32, %c0_i32_0 : i32, i32
  }
  func.func @transform_7(%arg0: i32) -> (i32, i32) {
    %c0_i32 = arith.constant 0 : i32
    %c0_i32_0 = arith.constant 0 : i32
    %c0_i32_1 = arith.constant 0 : i32
    return %c0_i32, %c0_i32_0 : i32, i32
  }
  func.func @transform_8(%arg0: i32) -> (i32, i32) {
    %c0_i32 = arith.constant 0 : i32
    %c0_i32_0 = arith.constant 0 : i32
    %c0_i32_1 = arith.constant 0 : i32
    return %c0_i32, %c0_i32_0 : i32, i32
  }
  func.func @transform_9(%arg0: i32) -> (i32, i32) {
    %c0_i32 = arith.constant 0 : i32
    %c0_i32_0 = arith.constant 0 : i32
    %c0_i32_1 = arith.constant 0 : i32
    return %c0_i32, %c0_i32_0 : i32, i32
  }
  func.func @transform_10(%arg0: i32) -> (i32, i32) {
    %c0_i32 = arith.constant 0 : i32
    %c0_i32_0 = arith.constant 0 : i32
    %c0_i32_1 = arith.constant 0 : i32
    return %c0_i32, %c0_i32_0 : i32, i32
  }
  func.func @transform_11(%arg0: i32) -> (i32, i32) {
    %c0_i32 = arith.constant 0 : i32
    %c0_i32_0 = arith.constant 0 : i32
    %c0_i32_1 = arith.constant 0 : i32
    return %c0_i32, %c0_i32_0 : i32, i32
  }
  func.func @transform_12(%arg0: i32) -> (i32, i32) {
    %c0_i32 = arith.constant 0 : i32
    %c0_i32_0 = arith.constant 0 : i32
    %c0_i32_1 = arith.constant 0 : i32
    return %c0_i32, %c0_i32_0 : i32, i32
  }
  func.func @transform_13(%arg0: i32) -> (i32, i32, i32) {
    %c0_i32 = arith.constant 0 : i32
    %c0_i32_0 = arith.constant 0 : i32
    %c0_i32_1 = arith.constant 0 : i32
    %c0_i32_2 = arith.constant 0 : i32
    return %c0_i32, %c0_i32_0, %c0_i32_1 : i32, i32, i32
  }
}

</mosaic_0001>

<llo_original>
// kernel: tpu_custom_call.1
$region0: #{tpu_custom_call.1}
  #allocation0 [shape = 'u32[]', space=smem, size = 0x4, offset = 0x4, fixed_abs, tag = 'smem constant byte address 0x4 - core index']
  #allocation1 [shape = 'u32[144,128]{1,0:T(1,128)}', space=vmem, size = 0x12000, scoped, tag = 'internal scratch']
  %s0 = inlined_call_operand.vmem [shape: f32[2,8,32], index: 0, kind: input, shape index: {}]
  %s1 = inlined_call_operand.vmem [shape: f32[16,16], index: 1, kind: input, shape index: {}]
  %s2 = inlined_call_operand.vmem [shape: f32[32,32], index: 2, kind: input, shape index: {}]
  %s3 = inlined_call_operand.vmem [shape: f32[32,32], index: 3, kind: input, shape index: {}]
  %s4 = inlined_call_operand.vmem [shape: f32[32,128], index: 4, kind: input, shape index: {}]
  %s5 = inlined_call_operand.vmem [shape: f32[32,128], index: 5, kind: input, shape index: {}]
  %s6 = inlined_call_operand.vmem [shape: f32[1,128], index: 6, kind: input, shape index: {}]
  %s7 = inlined_call_operand.vmem [shape: f32[128,32], index: 7, kind: input, shape index: {}]
  %s8 = inlined_call_operand.vmem [shape: f32[1,32], index: 8, kind: input, shape index: {}]
  %s9 = inlined_call_operand.vmem [shape: f32[1,32], index: 9, kind: input, shape index: {}]
  %s10 = inlined_call_operand.vmem [shape: f32[1,32], index: 10, kind: input, shape index: {}]
  %s11 = inlined_call_operand.vmem [shape: f32[1,32], index: 11, kind: input, shape index: {}]
  %s12 = inlined_call_operand.vmem [shape: f32[1,32], index: 12, kind: input, shape index: {}]
  %s13 = inlined_call_operand.hbm [shape: f32[2,8,32], index: 13, kind: output, shape index: {}]
  %s14 = sld [smem:[#allocation0]]
  $region62: #{tpu_custom_call.1} parent=0
    _
  %s16 = ssub.s32 1, %s14
  %s17 = scalar_select 0, %s16, %s14
  $region1: #{tpu_custom_call.1} parent=0
    #allocation2 [shape = 'u8[8192]{0}', space=vmem, size = 0x2000, scoped, tag = 'output window, operand 0, single buffered']
    #allocation3 [shape = 's32[1]{0}', space=sflag, size = 0x4, scoped, tag = 'scoped memory for tpu_custom_call.1']
    %18 = vsyncpa [#allocation3], 0
    // Predicated region
    $region2: #{tpu_custom_call.1} parent=1 // pred_check
      _
    $region3: #{tpu_custom_call.1} parent=1 // pred_check_branch
      %20 = sbr.rel (0) target = $region5
    $region4: #{tpu_custom_call.1} parent=1 // pred_region
      _
    $region5: #{tpu_custom_call.1} parent=1 // pred_fallthru
      _
    // Predicated region
    $region6: #{tpu_custom_call.1} parent=1 // pred_check
      _
    $region7: #{tpu_custom_call.1} parent=1 // pred_check_branch
      %22 = sbr.rel (0) target = $region9
    $region8: #{tpu_custom_call.1} parent=1 // pred_region
      _
    $region9: #{tpu_custom_call.1} parent=1 // pred_fallthru
      _
    // Predicated region
    $region10: #{tpu_custom_call.1} parent=1 // pred_check
      _
    $region11: #{tpu_custom_call.1} parent=1 // pred_check_branch
      %24 = sbr.rel (0) target = $region13
    $region12: #{tpu_custom_call.1} parent=1 // pred_region
      _
    $region13: #{tpu_custom_call.1} parent=1 // pred_fallthru
      _
    // Predicated region
    $region14: #{tpu_custom_call.1} parent=1 // pred_check
      _
    $region15: #{tpu_custom_call.1} parent=1 // pred_check_branch
      %26 = sbr.rel (0) target = $region17
    $region16: #{tpu_custom_call.1} parent=1 // pred_region
      _
    $region17: #{tpu_custom_call.1} parent=1 // pred_fallthru
      _
    // Predicated region
    $region18: #{tpu_custom_call.1} parent=1 // pred_check
      _
    $region19: #{tpu_custom_call.1} parent=1 // pred_check_branch
      %28 = sbr.rel (0) target = $region21
    $region20: #{tpu_custom_call.1} parent=1 // pred_region
      _
    $region21: #{tpu_custom_call.1} parent=1 // pred_fallthru
      _
    // Predicated region
    $region22: #{tpu_custom_call.1} parent=1 // pred_check
      _
    $region23: #{tpu_custom_call.1} parent=1 // pred_check_branch
      %30 = sbr.rel (0) target = $region25
    $region24: #{tpu_custom_call.1} parent=1 // pred_region
      _
    $region25: #{tpu_custom_call.1} parent=1 // pred_fallthru
      _
    // Predicated region
    $region26: #{tpu_custom_call.1} parent=1 // pred_check
      _
    $region27: #{tpu_custom_call.1} parent=1 // pred_check_branch
      %32 = sbr.rel (0) target = $region29
    $region28: #{tpu_custom_call.1} parent=1 // pred_region
      _
    $region29: #{tpu_custom_call.1} parent=1 // pred_fallthru
      _
    // Predicated region
    $region30: #{tpu_custom_call.1} parent=1 // pred_check
      _
    $region31: #{tpu_custom_call.1} parent=1 // pred_check_branch
      %34 = sbr.rel (0) target = $region33
    $region32: #{tpu_custom_call.1} parent=1 // pred_region
      _
    $region33: #{tpu_custom_call.1} parent=1 // pred_fallthru
      _
    // Predicated region
    $region34: #{tpu_custom_call.1} parent=1 // pred_check
      _
    $region35: #{tpu_custom_call.1} parent=1 // pred_check_branch
      %36 = sbr.rel (0) target = $region37
    $region36: #{tpu_custom_call.1} parent=1 // pred_region
      _
    $region37: #{tpu_custom_call.1} parent=1 // pred_fallthru
      _
    // Predicated region
    $region38: #{tpu_custom_call.1} parent=1 // pred_check
      _
    $region39: #{tpu_custom_call.1} parent=1 // pred_check_branch
      %38 = sbr.rel (0) target = $region41
    $region40: #{tpu_custom_call.1} parent=1 // pred_region
      _
    $region41: #{tpu_custom_call.1} parent=1 // pred_fallthru
      _
    // Predicated region
    $region42: #{tpu_custom_call.1} parent=1 // pred_check
      _
    $region43: #{tpu_custom_call.1} parent=1 // pred_check_branch
      %40 = sbr.rel (0) target = $region45
    $region44: #{tpu_custom_call.1} parent=1 // pred_region
      _
    $region45: #{tpu_custom_call.1} parent=1 // pred_fallthru
      _
    // Predicated region
    $region46: #{tpu_custom_call.1} parent=1 // pred_check
      _
    $region47: #{tpu_custom_call.1} parent=1 // pred_check_branch
      %42 = sbr.rel (0) target = $region49
    $region48: #{tpu_custom_call.1} parent=1 // pred_region
      _
    $region49: #{tpu_custom_call.1} parent=1 // pred_fallthru
      _
    // Predicated region
    $region50: #{tpu_custom_call.1} parent=1 // pred_check
      _
    $region51: #{tpu_custom_call.1} parent=1 // pred_check_branch
      %44 = sbr.rel (0) target = $region53
    $region52: #{tpu_custom_call.1} parent=1 // pred_region
      _
    $region53: #{tpu_custom_call.1} parent=1 // pred_fallthru
      _
    %v45 = vld [vmem:[%s0] sm:$0xff]
    %v46 = vld [vmem:[%s0 + $0x8] sm:$0xff]
    %v47 = vld [vmem:[%s1] sm:$0xff]
    %v48 = vld [vmem:[%s1 + $0x8] sm:$0xff]
    %v49 = vld [vmem:[%s2] sm:$0xff]
    %v50 = vld [vmem:[%s2 + $0x8] sm:$0xff]
    %v51 = vld [vmem:[%s2 + $0x10] sm:$0xff]
    %v52 = vld [vmem:[%s2 + $0x18] sm:$0xff]
    %vm53 = vcmask 261120
    %v55 = vsel %vm53, %v45, 0
    %v58 = vsel %vm53, %v46, 0
    %60 = vmatprep.subr.mxu0 0.0
    %61 = vmatpush1.msra.mxu0 %v49
    %62 = vmatprep.subr.mxu0 0.0
    %63 = vmatpush1.msra.mxu0 %v50
    %64 = vmatprep.subr.mxu0 0.0
    %65 = vmatpush1.msra.mxu0 %v51
    %66 = vmatprep.subr.mxu0 0.0
    %67 = vmatpush1.msra.mxu0 %v52
    %68 = vmatprep.subr.mxu0 0.0
    %69 = vmatpush1.msra.mxu0 0.0
    %70 = vmatprep.subr.mxu0 0.0
    %71 = vmatpush1.msra.mxu0 0.0
    %72 = vmatprep.subr.mxu0 0.0
    %73 = vmatpush1.msra.mxu0 0.0
    %74 = vmatprep.subr.mxu0 0.0
    %75 = vmatpush1.msra.mxu0 0.0
    %76 = vmatprep.subr.mxu0 0.0
    %77 = vmatpush1.msra.mxu0 0.0
    %78 = vmatprep.subr.mxu0 0.0
    %79 = vmatpush1.msra.mxu0 0.0
    %80 = vmatprep.subr.mxu0 0.0
    %81 = vmatpush1.msra.mxu0 0.0
    %82 = vmatprep.subr.mxu0 0.0
    %83 = vmatpush1.msra.mxu0 0.0
    %84 = vmatprep.subr.mxu0 0.0
    %85 = vmatpush1.msra.mxu0 0.0
    %86 = vmatprep.subr.mxu0 0.0
    %87 = vmatpush1.msra.mxu0 0.0
    %88 = vmatprep.subr.mxu0 0.0
    %89 = vmatpush1.msra.mxu0 0.0
    %90 = vmatprep.subr.mxu0 0.0
    %91 = vmatpush1.msra.mxu0 0.0
    %92 = vmatprep.subr.mxu0 0.0
    %93 = vmatpush1.msra.mxu0 0.0
    %94 = vmatprep.subr.mxu0 0.0
    %95 = vmatpush1.msra.mxu0 0.0
    %96 = vmatprep.subr.mxu0 0.0
    %97 = vmatpush1.msra.mxu0 0.0
    %98 = vmatprep.subr.mxu0 0.0
    %99 = vmatpush1.msra.mxu0 0.0
    %100 = vmatprep.subr.mxu0 0.0
    %101 = vmatpush1.msra.mxu0 0.0
    %102 = vmatprep.subr.mxu0 0.0
    %103 = vmatpush1.msra.mxu0 0.0
    %104 = vmatprep.subr.mxu0 0.0
    %105 = vmatpush1.msra.mxu0 0.0
    %106 = vmatprep.subr.mxu0 0.0
    %107 = vmatpush1.msra.mxu0 0.0
    %108 = vmatprep.subr.mxu0 0.0
    %109 = vmatpush1.msra.mxu0 0.0
    %110 = vmatprep.subr.mxu0 0.0
    %111 = vmatpush1.msra.mxu0 0.0
    %112 = vmatprep.subr.mxu0 0.0
    %113 = vmatpush1.msra.mxu0 0.0
    %114 = vmatprep.subr.mxu0 0.0
    %115 = vmatpush1.msra.mxu0 0.0
    %116 = vmatprep.subr.mxu0 0.0
    %117 = vmatpush1.msra.mxu0 0.0
    %118 = vmatprep.subr.mxu0 0.0
    %119 = vmatpush1.msra.mxu0 0.0
    %120 = vmatprep.subr.mxu0 0.0
    %121 = vmatpush1.msra.mxu0 0.0
    %122 = vmatprep.subr.mxu0 0.0
    %123 = vmatpush1.msra.mxu0 0.0
    %124 = vmatprep.mubr.f32.mxu0 0.0
    %125 = vmatmul.mubr.f32.gmra.mrb[0].mxu0 %v55
    %v126 = vpop.f32.mrb[0].mxu0
    %v127 = vadd.f32 0.0, %v126
    %v128 = vpop.f32.mrb[0].mxu0
    %129 = vmatprep.mubr.f32.mxu0 0.0
    %130 = vmatmul.mubr.f32.gmra.mrb[0].mxu0 %v58
    %v131 = vpop.f32.mrb[0].mxu0
    %v132 = vadd.f32 0.0, %v131
    %v133 = vpop.f32.mrb[0].mxu0
    %134 = vdwg.mxu0
    %v135 = vld [vmem:[%s3] sm:$0xff]
    %v136 = vld [vmem:[%s3 + $0x8] sm:$0xff]
    %v137 = vld [vmem:[%s3 + $0x10] sm:$0xff]
    %v138 = vld [vmem:[%s3 + $0x18] sm:$0xff]
    %139 = vmatprep.subr.mxu0 0.0
    %140 = vmatpush1.msra.mxu0 %v135
    %141 = vmatprep.subr.mxu0 0.0
    %142 = vmatpush1.msra.mxu0 %v136
    %143 = vmatprep.subr.mxu0 0.0
    %144 = vmatpush1.msra.mxu0 %v137
    %145 = vmatprep.subr.mxu0 0.0
    %146 = vmatpush1.msra.mxu0 %v138
    %147 = vmatprep.subr.mxu0 0.0
    %148 = vmatpush1.msra.mxu0 0.0
    %149 = vmatprep.subr.mxu0 0.0
    %150 = vmatpush1.msra.mxu0 0.0
    %151 = vmatprep.subr.mxu0 0.0
    %152 = vmatpush1.msra.mxu0 0.0
    %153 = vmatprep.subr.mxu0 0.0
    %154 = vmatpush1.msra.mxu0 0.0
    %155 = vmatprep.subr.mxu0 0.0
    %156 = vmatpush1.msra.mxu0 0.0
    %157 = vmatprep.subr.mxu0 0.0
    %158 = vmatpush1.msra.mxu0 0.0
    %159 = vmatprep.subr.mxu0 0.0
    %160 = vmatpush1.msra.mxu0 0.0
    %161 = vmatprep.subr.mxu0 0.0
    %162 = vmatpush1.msra.mxu0 0.0
    %163 = vmatprep.subr.mxu0 0.0
    %164 = vmatpush1.msra.mxu0 0.0
    %165 = vmatprep.subr.mxu0 0.0
    %166 = vmatpush1.msra.mxu0 0.0
    %167 = vmatprep.subr.mxu0 0.0
    %168 = vmatpush1.msra.mxu0 0.0
    %169 = vmatprep.subr.mxu0 0.0
    %170 = vmatpush1.msra.mxu0 0.0
    %171 = vmatprep.subr.mxu0 0.0
    %172 = vmatpush1.msra.mxu0 0.0
    %173 = vmatprep.subr.mxu0 0.0
    %174 = vmatpush1.msra.mxu0 0.0
    %175 = vmatprep.subr.mxu0 0.0
    %176 = vmatpush1.msra.mxu0 0.0
    %177 = vmatprep.subr.mxu0 0.0
    %178 = vmatpush1.msra.mxu0 0.0
    %179 = vmatprep.subr.mxu0 0.0
    %180 = vmatpush1.msra.mxu0 0.0
    %181 = vmatprep.subr.mxu0 0.0
    %182 = vmatpush1.msra.mxu0 0.0
    %183 = vmatprep.subr.mxu0 0.0
    %184 = vmatpush1.msra.mxu0 0.0
    %185 = vmatprep.subr.mxu0 0.0
    %186 = vmatpush1.msra.mxu0 0.0
    %187 = vmatprep.subr.mxu0 0.0
    %188 = vmatpush1.msra.mxu0 0.0
    %189 = vmatprep.subr.mxu0 0.0
    %190 = vmatpush1.msra.mxu0 0.0
    %191 = vmatprep.subr.mxu0 0.0
    %192 = vmatpush1.msra.mxu0 0.0
    %193 = vmatprep.subr.mxu0 0.0
    %194 = vmatpush1.msra.mxu0 0.0
    %195 = vmatprep.subr.mxu0 0.0
    %196 = vmatpush1.msra.mxu0 0.0
    %197 = vmatprep.subr.mxu0 0.0
    %198 = vmatpush1.msra.mxu0 0.0
    %199 = vmatprep.subr.mxu0 0.0
    %200 = vmatpush1.msra.mxu0 0.0
    %201 = vmatprep.subr.mxu0 0.0
    %202 = vmatpush1.msra.mxu0 0.0
    %203 = vmatprep.mubr.f32.mxu0 0.0
    %204 = vmatmul.mubr.f32.gmra.mrb[0].mxu0 %v55
    %v205 = vpop.f32.mrb[0].mxu0
    %v206 = vadd.f32 0.0, %v205
    %v207 = vpop.f32.mrb[0].mxu0
    %208 = vmatprep.mubr.f32.mxu0 0.0
    %209 = vmatmul.mubr.f32.gmra.mrb[0].mxu0 %v58
    %v210 = vpop.f32.mrb[0].mxu0
    %v211 = vadd.f32 0.0, %v210
    %v212 = vpop.f32.mrb[0].mxu0
    %213 = vdwg.mxu0
    %v214 = vld [vmem:[%s4] sm:$0xff]
    %v215 = vld [vmem:[%s4 + $0x8] sm:$0xff]
    %v216 = vld [vmem:[%s4 + $0x10] sm:$0xff]
    %v217 = vld [vmem:[%s4 + $0x18] sm:$0xff]
    %218 = vmatprep.subr.mxu0 0.0
    %219 = vmatpush1.msra.mxu0 %v214
    %220 = vmatprep.subr.mxu0 0.0
    %221 = vmatpush1.msra.mxu0 %v215
    %222 = vmatprep.subr.mxu0 0.0
    %223 = vmatpush1.msra.mxu0 %v216
    %224 = vmatprep.subr.mxu0 0.0
    %225 = vmatpush1.msra.mxu0 %v217
    %226 = vmatprep.subr.mxu0 0.0
    %227 = vmatpush1.msra.mxu0 0.0
    %228 = vmatprep.subr.mxu0 0.0
    %229 = vmatpush1.msra.mxu0 0.0
    %230 = vmatprep.subr.mxu0 0.0
    %231 = vmatpush1.msra.mxu0 0.0
    %232 = vmatprep.subr.mxu0 0.0
    %233 = vmatpush1.msra.mxu0 0.0
    %234 = vmatprep.subr.mxu0 0.0
    %235 = vmatpush1.msra.mxu0 0.0
    %236 = vmatprep.subr.mxu0 0.0
    %237 = vmatpush1.msra.mxu0 0.0
    %238 = vmatprep.subr.mxu0 0.0
    %239 = vmatpush1.msra.mxu0 0.0
    %240 = vmatprep.subr.mxu0 0.0
    %241 = vmatpush1.msra.mxu0 0.0
    %242 = vmatprep.subr.mxu0 0.0
    %243 = vmatpush1.msra.mxu0 0.0
    %244 = vmatprep.subr.mxu0 0.0
    %245 = vmatpush1.msra.mxu0 0.0
    %246 = vmatprep.subr.mxu0 0.0
    %247 = vmatpush1.msra.mxu0 0.0
    %248 = vmatprep.subr.mxu0 0.0
    %249 = vmatpush1.msra.mxu0 0.0
    %250 = vmatprep.subr.mxu0 0.0
    %251 = vmatpush1.msra.mxu0 0.0
    %252 = vmatprep.subr.mxu0 0.0
    %253 = vmatpush1.msra.mxu0 0.0
    %254 = vmatprep.subr.mxu0 0.0
    %255 = vmatpush1.msra.mxu0 0.0
    %256 = vmatprep.subr.mxu0 0.0
    %257 = vmatpush1.msra.mxu0 0.0
    %258 = vmatprep.subr.mxu0 0.0
    %259 = vmatpush1.msra.mxu0 0.0
    %260 = vmatprep.subr.mxu0 0.0
    %261 = vmatpush1.msra.mxu0 0.0
    %262 = vmatprep.subr.mxu0 0.0
    %263 = vmatpush1.msra.mxu0 0.0
    %264 = vmatprep.subr.mxu0 0.0
    %265 = vmatpush1.msra.mxu0 0.0
    %266 = vmatprep.subr.mxu0 0.0
    %267 = vmatpush1.msra.mxu0 0.0
    %268 = vmatprep.subr.mxu0 0.0
    %269 = vmatpush1.msra.mxu0 0.0
    %270 = vmatprep.subr.mxu0 0.0
    %271 = vmatpush1.msra.mxu0 0.0
    %272 = vmatprep.subr.mxu0 0.0
    %273 = vmatpush1.msra.mxu0 0.0
    %274 = vmatprep.subr.mxu0 0.0
    %275 = vmatpush1.msra.mxu0 0.0
    %276 = vmatprep.subr.mxu0 0.0
    %277 = vmatpush1.msra.mxu0 0.0
    %278 = vmatprep.subr.mxu0 0.0
    %279 = vmatpush1.msra.mxu0 0.0
    %280 = vmatprep.subr.mxu0 0.0
    %281 = vmatpush1.msra.mxu0 0.0
    %282 = vmatprep.mubr.f32.mxu0 0.0
    %283 = vmatmul.mubr.f32.gmra.mrb[0].mxu0 %v55
    %v284 = vpop.f32.mrb[0].mxu0
    %v285 = vadd.f32 0.0, %v284
    %v286 = vpop.f32.mrb[0].mxu0
    %287 = vmatprep.mubr.f32.mxu0 0.0
    %288 = vmatmul.mubr.f32.gmra.mrb[0].mxu0 %v58
    %v289 = vpop.f32.mrb[0].mxu0
    %v290 = vadd.f32 0.0, %v289
    %v291 = vpop.f32.mrb[0].mxu0
    %292 = vdwg.mxu0
    %vm293 = vcmask 64512
    %v295 = vsel %vm293, %v127, 0
    %v298 = vsel %vm293, %v132, 0
    %v301 = vsel %vm293, %v206, 0
    %v304 = vsel %vm293, %v211, 0
    %306 = vmatprep.subr.mxu0 0.0
    %307 = vmatpush1.xpose.msra.mxu0 %v301
    %308 = vmatprep.subr.mxu0 0.0
    %309 = vmatpush1.xpose.msra.mxu0 %v304
    %310 = vmatprep.subr.mxu0 0.0
    %311 = vmatpush1.xpose.msra.mxu0 0.0
    %312 = vmatprep.subr.mxu0 0.0
    %313 = vmatpush1.xpose.msra.mxu0 0.0
    %314 = vmatprep.subr.mxu0 0.0
    %315 = vmatpush1.xpose.msra.mxu0 0.0
    %316 = vmatprep.subr.mxu0 0.0
    %317 = vmatpush1.xpose.msra.mxu0 0.0
    %318 = vmatprep.subr.mxu0 0.0
    %319 = vmatpush1.xpose.msra.mxu0 0.0
    %320 = vmatprep.subr.mxu0 0.0
    %321 = vmatpush1.xpose.msra.mxu0 0.0
    %322 = vmatprep.subr.mxu0 0.0
    %323 = vmatpush1.xpose.msra.mxu0 0.0
    %324 = vmatprep.subr.mxu0 0.0
    %325 = vmatpush1.xpose.msra.mxu0 0.0
    %326 = vmatprep.subr.mxu0 0.0
    %327 = vmatpush1.xpose.msra.mxu0 0.0
    %328 = vmatprep.subr.mxu0 0.0
    %329 = vmatpush1.xpose.msra.mxu0 0.0
    %330 = vmatprep.subr.mxu0 0.0
    %331 = vmatpush1.xpose.msra.mxu0 0.0
    %332 = vmatprep.subr.mxu0 0.0
    %333 = vmatpush1.xpose.msra.mxu0 0.0
    %334 = vmatprep.subr.mxu0 0.0
    %335 = vmatpush1.xpose.msra.mxu0 0.0
    %336 = vmatprep.subr.mxu0 0.0
    %337 = vmatpush1.xpose.msra.mxu0 0.0
    %338 = vmatprep.subr.mxu0 0.0
    %339 = vmatpush1.xpose.msra.mxu0 0.0
    %340 = vmatprep.subr.mxu0 0.0
    %341 = vmatpush1.xpose.msra.mxu0 0.0
    %342 = vmatprep.subr.mxu0 0.0
    %343 = vmatpush1.xpose.msra.mxu0 0.0
    %344 = vmatprep.subr.mxu0 0.0
    %345 = vmatpush1.xpose.msra.mxu0 0.0
    %346 = vmatprep.subr.mxu0 0.0
    %347 = vmatpush1.xpose.msra.mxu0 0.0
    %348 = vmatprep.subr.mxu0 0.0
    %349 = vmatpush1.xpose.msra.mxu0 0.0
    %350 = vmatprep.subr.mxu0 0.0
    %351 = vmatpush1.xpose.msra.mxu0 0.0
    %352 = vmatprep.subr.mxu0 0.0
    %353 = vmatpush1.xpose.msra.mxu0 0.0
    %354 = vmatprep.subr.mxu0 0.0
    %355 = vmatpush1.xpose.msra.mxu0 0.0
    %356 = vmatprep.subr.mxu0 0.0
    %357 = vmatpush1.xpose.msra.mxu0 0.0
    %358 = vmatprep.subr.mxu0 0.0
    %359 = vmatpush1.xpose.msra.mxu0 0.0
    %360 = vmatprep.subr.mxu0 0.0
    %361 = vmatpush1.xpose.msra.mxu0 0.0
    %362 = vmatprep.subr.mxu0 0.0
    %363 = vmatpush1.xpose.msra.mxu0 0.0
    %364 = vmatprep.subr.mxu0 0.0
    %365 = vmatpush1.xpose.msra.mxu0 0.0
    %366 = vmatprep.subr.mxu0 0.0
    %367 = vmatpush1.xpose.msra.mxu0 0.0
    %368 = vmatprep.subr.mxu0 0.0
    %369 = vmatpush1.xpose.msra.mxu0 0.0
    %370 = vmatprep.mubr.f32.mxu0 0.0
    %371 = vmatmul.mubr.f32.gmra.mrb[0].mxu0 %v295
    %v372 = vpop.f32.mrb[0].mxu0
    %v373 = vadd.f32 %v47, %v372
    %v374 = vpop.f32.mrb[0].mxu0
    %375 = vmatprep.mubr.f32.mxu0 0.0
    %376 = vmatmul.mubr.f32.gmra.mrb[0].mxu0 %v298
    %v377 = vpop.f32.mrb[0].mxu0
    %v378 = vadd.f32 %v48, %v377
    %v379 = vpop.f32.mrb[0].mxu0
    %380 = vdwg.mxu0
    %vm381 = vcmask 130048
    %v382 = vsel %vm381, %v373, -inf
    %383 = vmax.xlane.f32.xlu0 %v382
    %v384 = vpop.xlane.xlu0 %383
    %v385 = vsel %vm381, %v378, -inf
    %386 = vmax.xlane.f32.xlu0 %v385
    %v387 = vpop.xlane.xlu0 %386
    %v388 = vsub.f32 %v373, %v384
    %v389 = vsub.f32 %v378, %v387
    %v390 = vmul.f32 %v388, 1.442695
    %v391 = vpow.pop %v390
    %v392 = vmul.f32 %v389, 1.442695
    %v393 = vpow.pop %v392
    %v394 = vsel %vm381, %v391, 0.0
    %395 = vadd.xlane.f32.xlu0 %v394
    %v396 = vpop.xlane.xlu0 %395
    %v397 = vsel %vm381, %v393, 0.0
    %398 = vadd.xlane.f32.xlu0 %v397
    %v399 = vpop.xlane.xlu0 %398
    %v400 = vrcp.pop %v396
    %v401 = vrcp.pop %v399
    %v402 = vmul.f32 %v396, %v400
    %v403 = vmul.f32 %v399, %v401
    %v404 = vsub.f32 2.0, %v402
    %v405 = vsub.f32 2.0, %v403
    %v406 = vmul.f32 %v400, %v404
    %v407 = vmul.f32 %v401, %v405
    %v408 = vmul.f32 %v391, %v406
    %v409 = vmul.f32 %v393, %v407
    %410 = vrot.lane.b32.xlu0 %v127, 120
    %v411 = vpop.permute.xlu0 %410
    %412 = vrot.lane.b32.xlu0 %v132, 120
    %v413 = vpop.permute.xlu0 %412
    %414 = vrot.lane.b32.xlu0 %v206, 120
    %v415 = vpop.permute.xlu0 %414
    %416 = vrot.lane.b32.xlu0 %v211, 120
    %v417 = vpop.permute.xlu0 %416
    %v418 = vsel %vm293, %v411, 0
    %v420 = vsel %vm293, %v413, 0
    %v422 = vsel %vm293, %v415, 0
    %v424 = vsel %vm293, %v417, 0
    %426 = vmatprep.subr.mxu0 0.0
    %427 = vmatpush1.xpose.msra.mxu0 %v422
    %428 = vmatprep.subr.mxu0 0.0
    %429 = vmatpush1.xpose.msra.mxu0 %v424
    %430 = vmatprep.subr.mxu0 0.0
    %431 = vmatpush1.xpose.msra.mxu0 0.0
    %432 = vmatprep.subr.mxu0 0.0
    %433 = vmatpush1.xpose.msra.mxu0 0.0
    %434 = vmatprep.subr.mxu0 0.0
    %435 = vmatpush1.xpose.msra.mxu0 0.0
    %436 = vmatprep.subr.mxu0 0.0
    %437 = vmatpush1.xpose.msra.mxu0 0.0
    %438 = vmatprep.subr.mxu0 0.0
    %439 = vmatpush1.xpose.msra.mxu0 0.0
    %440 = vmatprep.subr.mxu0 0.0
    %441 = vmatpush1.xpose.msra.mxu0 0.0
    %442 = vmatprep.subr.mxu0 0.0
    %443 = vmatpush1.xpose.msra.mxu0 0.0
    %444 = vmatprep.subr.mxu0 0.0
    %445 = vmatpush1.xpose.msra.mxu0 0.0
    %446 = vmatprep.subr.mxu0 0.0
    %447 = vmatpush1.xpose.msra.mxu0 0.0
    %448 = vmatprep.subr.mxu0 0.0
    %449 = vmatpush1.xpose.msra.mxu0 0.0
    %450 = vmatprep.subr.mxu0 0.0
    %451 = vmatpush1.xpose.msra.mxu0 0.0
    %452 = vmatprep.subr.mxu0 0.0
    %453 = vmatpush1.xpose.msra.mxu0 0.0
    %454 = vmatprep.subr.mxu0 0.0
    %455 = vmatpush1.xpose.msra.mxu0 0.0
    %456 = vmatprep.subr.mxu0 0.0
    %457 = vmatpush1.xpose.msra.mxu0 0.0
    %458 = vmatprep.subr.mxu0 0.0
    %459 = vmatpush1.xpose.msra.mxu0 0.0
    %460 = vmatprep.subr.mxu0 0.0
    %461 = vmatpush1.xpose.msra.mxu0 0.0
    %462 = vmatprep.subr.mxu0 0.0
    %463 = vmatpush1.xpose.msra.mxu0 0.0
    %464 = vmatprep.subr.mxu0 0.0
    %465 = vmatpush1.xpose.msra.mxu0 0.0
    %466 = vmatprep.subr.mxu0 0.0
    %467 = vmatpush1.xpose.msra.mxu0 0.0
    %468 = vmatprep.subr.mxu0 0.0
    %469 = vmatpush1.xpose.msra.mxu0 0.0
    %470 = vmatprep.subr.mxu0 0.0
    %471 = vmatpush1.xpose.msra.mxu0 0.0
    %472 = vmatprep.subr.mxu0 0.0
    %473 = vmatpush1.xpose.msra.mxu0 0.0
    %474 = vmatprep.subr.mxu0 0.0
    %475 = vmatpush1.xpose.msra.mxu0 0.0
    %476 = vmatprep.subr.mxu0 0.0
    %477 = vmatpush1.xpose.msra.mxu0 0.0
    %478 = vmatprep.subr.mxu0 0.0
    %479 = vmatpush1.xpose.msra.mxu0 0.0
    %480 = vmatprep.subr.mxu0 0.0
    %481 = vmatpush1.xpose.msra.mxu0 0.0
    %482 = vmatprep.subr.mxu0 0.0
    %483 = vmatpush1.xpose.msra.mxu0 0.0
    %484 = vmatprep.subr.mxu0 0.0
    %485 = vmatpush1.xpose.msra.mxu0 0.0
    %486 = vmatprep.subr.mxu0 0.0
    %487 = vmatpush1.xpose.msra.mxu0 0.0
    %488 = vmatprep.subr.mxu0 0.0
    %489 = vmatpush1.xpose.msra.mxu0 0.0
    %490 = vmatprep.mubr.f32.mxu0 0.0
    %491 = vmatmul.mubr.f32.gmra.mrb[0].mxu0 %v418
    %v492 = vpop.f32.mrb[0].mxu0
    %v493 = vadd.f32 %v47, %v492
    %v494 = vpop.f32.mrb[0].mxu0
    %495 = vmatprep.mubr.f32.mxu0 0.0
    %496 = vmatmul.mubr.f32.gmra.mrb[0].mxu0 %v420
    %v497 = vpop.f32.mrb[0].mxu0
    %v498 = vadd.f32 %v48, %v497
    %v499 = vpop.f32.mrb[0].mxu0
    %500 = vdwg.mxu0
    %v501 = vsel %vm381, %v493, -inf
    %502 = vmax.xlane.f32.xlu0 %v501
    %v503 = vpop.xlane.xlu0 %502
    %v504 = vsel %vm381, %v498, -inf
    %505 = vmax.xlane.f32.xlu0 %v504
    %v506 = vpop.xlane.xlu0 %505
    %v507 = vsub.f32 %v493, %v503
    %v508 = vsub.f32 %v498, %v506
    %v509 = vmul.f32 %v507, 1.442695
    %v510 = vpow.pop %v509
    %v511 = vmul.f32 %v508, 1.442695
    %v512 = vpow.pop %v511
    %v513 = vsel %vm381, %v510, 0.0
    %514 = vadd.xlane.f32.xlu0 %v513
    %v515 = vpop.xlane.xlu0 %514
    %v516 = vsel %vm381, %v512, 0.0
    %517 = vadd.xlane.f32.xlu0 %v516
    %v518 = vpop.xlane.xlu0 %517
    %v519 = vrcp.pop %v515
    %v520 = vrcp.pop %v518
    %v521 = vmul.f32 %v515, %v519
    %v522 = vmul.f32 %v518, %v520
    %v523 = vsub.f32 2.0, %v521
    %v524 = vsub.f32 2.0, %v522
    %v525 = vmul.f32 %v519, %v523
    %v526 = vmul.f32 %v520, %v524
    %v527 = vmul.f32 %v510, %v525
    %v528 = vmul.f32 %v512, %v526
    %531 = vrot.lane.b32.xlu0 %v285, 96
    %v532 = vpop.permute.xlu0 %531
    %533 = vrot.lane.b32.xlu0 %v290, 96
    %v534 = vpop.permute.xlu0 %533
    %v538 = vsel %vm381, %v527, 0
    %v541 = vsel %vm381, %v528, 0
    %543 = vmatprep.subr.mxu0 0.0
    %544 = vmatpush1.msra.mxu0 %v532
    %545 = vmatprep.subr.mxu0 0.0
    %546 = vmatpush1.msra.mxu0 %v534
    %547 = vmatprep.subr.mxu0 0.0
    %548 = vmatpush1.msra.mxu0 0.0
    %549 = vmatprep.subr.mxu0 0.0
    %550 = vmatpush1.msra.mxu0 0.0
    %551 = vmatprep.subr.mxu0 0.0
    %552 = vmatpush1.msra.mxu0 0.0
    %553 = vmatprep.subr.mxu0 0.0
    %554 = vmatpush1.msra.mxu0 0.0
    %555 = vmatprep.subr.mxu0 0.0
    %556 = vmatpush1.msra.mxu0 0.0
    %557 = vmatprep.subr.mxu0 0.0
    %558 = vmatpush1.msra.mxu0 0.0
    %559 = vmatprep.subr.mxu0 0.0
    %560 = vmatpush1.msra.mxu0 0.0
    %561 = vmatprep.subr.mxu0 0.0
    %562 = vmatpush1.msra.mxu0 0.0
    %563 = vmatprep.subr.mxu0 0.0
    %564 = vmatpush1.msra.mxu0 0.0
    %565 = vmatprep.subr.mxu0 0.0
    %566 = vmatpush1.msra.mxu0 0.0
    %567 = vmatprep.subr.mxu0 0.0
    %568 = vmatpush1.msra.mxu0 0.0
    %569 = vmatprep.subr.mxu0 0.0
    %570 = vmatpush1.msra.mxu0 0.0
    %571 = vmatprep.subr.mxu0 0.0
    %572 = vmatpush1.msra.mxu0 0.0
    %573 = vmatprep.subr.mxu0 0.0
    %574 = vmatpush1.msra.mxu0 0.0
    %575 = vmatprep.subr.mxu0 0.0
    %576 = vmatpush1.msra.mxu0 0.0
    %577 = vmatprep.subr.mxu0 0.0
    %578 = vmatpush1.msra.mxu0 0.0
    %579 = vmatprep.subr.mxu0 0.0
    %580 = vmatpush1.msra.mxu0 0.0
    %581 = vmatprep.subr.mxu0 0.0
    %582 = vmatpush1.msra.mxu0 0.0
    %583 = vmatprep.subr.mxu0 0.0
    %584 = vmatpush1.msra.mxu0 0.0
    %585 = vmatprep.subr.mxu0 0.0
    %586 = vmatpush1.msra.mxu0 0.0
    %587 = vmatprep.subr.mxu0 0.0
    %588 = vmatpush1.msra.mxu0 0.0
    %589 = vmatprep.subr.mxu0 0.0
    %590 = vmatpush1.msra.mxu0 0.0
    %591 = vmatprep.subr.mxu0 0.0
    %592 = vmatpush1.msra.mxu0 0.0
    %593 = vmatprep.subr.mxu0 0.0
    %594 = vmatpush1.msra.mxu0 0.0
    %595 = vmatprep.subr.mxu0 0.0
    %596 = vmatpush1.msra.mxu0 0.0
    %597 = vmatprep.subr.mxu0 0.0
    %598 = vmatpush1.msra.mxu0 0.0
    %599 = vmatprep.subr.mxu0 0.0
    %600 = vmatpush1.msra.mxu0 0.0
    %601 = vmatprep.subr.mxu0 0.0
    %602 = vmatpush1.msra.mxu0 0.0
    %603 = vmatprep.subr.mxu0 0.0
    %604 = vmatpush1.msra.mxu0 0.0
    %605 = vmatprep.subr.mxu0 0.0
    %606 = vmatpush1.msra.mxu0 0.0
    %607 = vmatprep.mubr.f32.mxu0 0.0
    %608 = vmatmul.mubr.f32.gmra.mrb[0].mxu0 %v538
    %v609 = vpop.f32.mrb[0].mxu0
    %v610 = vadd.f32 0.0, %v609
    %v611 = vpop.f32.mrb[0].mxu0
    %612 = vmatprep.mubr.f32.mxu0 0.0
    %613 = vmatmul.mubr.f32.gmra.mrb[0].mxu0 %v541
    %v614 = vpop.f32.mrb[0].mxu0
    %v615 = vadd.f32 0.0, %v614
    %v616 = vpop.f32.mrb[0].mxu0
    %617 = vdwg.mxu0
    %v619 = vsel %vm381, %v408, 0
    %v622 = vsel %vm381, %v409, 0
    %624 = vmatprep.subr.mxu0 0.0
    %625 = vmatpush1.msra.mxu0 %v285
    %626 = vmatprep.subr.mxu0 0.0
    %627 = vmatpush1.msra.mxu0 %v290
    %628 = vmatprep.subr.mxu0 0.0
    %629 = vmatpush1.msra.mxu0 0.0
    %630 = vmatprep.subr.mxu0 0.0
    %631 = vmatpush1.msra.mxu0 0.0
    %632 = vmatprep.subr.mxu0 0.0
    %633 = vmatpush1.msra.mxu0 0.0
    %634 = vmatprep.subr.mxu0 0.0
    %635 = vmatpush1.msra.mxu0 0.0
    %636 = vmatprep.subr.mxu0 0.0
    %637 = vmatpush1.msra.mxu0 0.0
    %638 = vmatprep.subr.mxu0 0.0
    %639 = vmatpush1.msra.mxu0 0.0
    %640 = vmatprep.subr.mxu0 0.0
    %641 = vmatpush1.msra.mxu0 0.0
    %642 = vmatprep.subr.mxu0 0.0
    %643 = vmatpush1.msra.mxu0 0.0
    %644 = vmatprep.subr.mxu0 0.0
    %645 = vmatpush1.msra.mxu0 0.0
    %646 = vmatprep.subr.mxu0 0.0
    %647 = vmatpush1.msra.mxu0 0.0
    %648 = vmatprep.subr.mxu0 0.0
    %649 = vmatpush1.msra.mxu0 0.0
    %650 = vmatprep.subr.mxu0 0.0
    %651 = vmatpush1.msra.mxu0 0.0
    %652 = vmatprep.subr.mxu0 0.0
    %653 = vmatpush1.msra.mxu0 0.0
    %654 = vmatprep.subr.mxu0 0.0
    %655 = vmatpush1.msra.mxu0 0.0
    %656 = vmatprep.subr.mxu0 0.0
    %657 = vmatpush1.msra.mxu0 0.0
    %658 = vmatprep.subr.mxu0 0.0
    %659 = vmatpush1.msra.mxu0 0.0
    %660 = vmatprep.subr.mxu0 0.0
    %661 = vmatpush1.msra.mxu0 0.0
    %662 = vmatprep.subr.mxu0 0.0
    %663 = vmatpush1.msra.mxu0 0.0
    %664 = vmatprep.subr.mxu0 0.0
    %665 = vmatpush1.msra.mxu0 0.0
    %666 = vmatprep.subr.mxu0 0.0
    %667 = vmatpush1.msra.mxu0 0.0
    %668 = vmatprep.subr.mxu0 0.0
    %669 = vmatpush1.msra.mxu0 0.0
    %670 = vmatprep.subr.mxu0 0.0
    %671 = vmatpush1.msra.mxu0 0.0
    %672 = vmatprep.subr.mxu0 0.0
    %673 = vmatpush1.msra.mxu0 0.0
    %674 = vmatprep.subr.mxu0 0.0
    %675 = vmatpush1.msra.mxu0 0.0
    %676 = vmatprep.subr.mxu0 0.0
    %677 = vmatpush1.msra.mxu0 0.0
    %678 = vmatprep.subr.mxu0 0.0
    %679 = vmatpush1.msra.mxu0 0.0
    %680 = vmatprep.subr.mxu0 0.0
    %681 = vmatpush1.msra.mxu0 0.0
    %682 = vmatprep.subr.mxu0 0.0
    %683 = vmatpush1.msra.mxu0 0.0
    %684 = vmatprep.subr.mxu0 0.0
    %685 = vmatpush1.msra.mxu0 0.0
    %686 = vmatprep.subr.mxu0 0.0
    %687 = vmatpush1.msra.mxu0 0.0
    %688 = vmatprep.mubr.f32.mxu0 0.0
    %689 = vmatmul.mubr.f32.gmra.mrb[0].mxu0 %v619
    %v690 = vpop.f32.mrb[0].mxu0
    %v691 = vadd.f32 %v610, %v690
    %v692 = vpop.f32.mrb[0].mxu0
    %693 = vmatprep.mubr.f32.mxu0 0.0
    %694 = vmatmul.mubr.f32.gmra.mrb[0].mxu0 %v622
    %v695 = vpop.f32.mrb[0].mxu0
    %v696 = vadd.f32 %v615, %v695
    %v697 = vpop.f32.mrb[0].mxu0
    %698 = vdwg.mxu0
    %699 = vrot.lane.b32.xlu0 %v127, 112
    %v700 = vpop.permute.xlu0 %699
    %701 = vrot.lane.b32.xlu0 %v132, 112
    %v702 = vpop.permute.xlu0 %701
    %703 = vrot.lane.b32.xlu0 %v206, 112
    %v704 = vpop.permute.xlu0 %703
    %705 = vrot.lane.b32.xlu0 %v211, 112
    %v706 = vpop.permute.xlu0 %705
    %v707 = vsel %vm293, %v700, 0
    %v709 = vsel %vm293, %v702, 0
    %v711 = vsel %vm293, %v704, 0
    %v713 = vsel %vm293, %v706, 0
    %715 = vmatprep.subr.mxu0 0.0
    %716 = vmatpush1.xpose.msra.mxu0 %v711
    %717 = vmatprep.subr.mxu0 0.0
    %718 = vmatpush1.xpose.msra.mxu0 %v713
    %719 = vmatprep.subr.mxu0 0.0
    %720 = vmatpush1.xpose.msra.mxu0 0.0
    %721 = vmatprep.subr.mxu0 0.0
    %722 = vmatpush1.xpose.msra.mxu0 0.0
    %723 = vmatprep.subr.mxu0 0.0
    %724 = vmatpush1.xpose.msra.mxu0 0.0
    %725 = vmatprep.subr.mxu0 0.0
    %726 = vmatpush1.xpose.msra.mxu0 0.0
    %727 = vmatprep.subr.mxu0 0.0
    %728 = vmatpush1.xpose.msra.mxu0 0.0
    %729 = vmatprep.subr.mxu0 0.0
    %730 = vmatpush1.xpose.msra.mxu0 0.0
    %731 = vmatprep.subr.mxu0 0.0
    %732 = vmatpush1.xpose.msra.mxu0 0.0
    %733 = vmatprep.subr.mxu0 0.0
    %734 = vmatpush1.xpose.msra.mxu0 0.0
    %735 = vmatprep.subr.mxu0 0.0
    %736 = vmatpush1.xpose.msra.mxu0 0.0
    %737 = vmatprep.subr.mxu0 0.0
    %738 = vmatpush1.xpose.msra.mxu0 0.0
    %739 = vmatprep.subr.mxu0 0.0
    %740 = vmatpush1.xpose.msra.mxu0 0.0
    %741 = vmatprep.subr.mxu0 0.0
    %742 = vmatpush1.xpose.msra.mxu0 0.0
    %743 = vmatprep.subr.mxu0 0.0
    %744 = vmatpush1.xpose.msra.mxu0 0.0
    %745 = vmatprep.subr.mxu0 0.0
    %746 = vmatpush1.xpose.msra.mxu0 0.0
    %747 = vmatprep.subr.mxu0 0.0
    %748 = vmatpush1.xpose.msra.mxu0 0.0
    %749 = vmatprep.subr.mxu0 0.0
    %750 = vmatpush1.xpose.msra.mxu0 0.0
    %751 = vmatprep.subr.mxu0 0.0
    %752 = vmatpush1.xpose.msra.mxu0 0.0
    %753 = vmatprep.subr.mxu0 0.0
    %754 = vmatpush1.xpose.msra.mxu0 0.0
    %755 = vmatprep.subr.mxu0 0.0
    %756 = vmatpush1.xpose.msra.mxu0 0.0
    %757 = vmatprep.subr.mxu0 0.0
    %758 = vmatpush1.xpose.msra.mxu0 0.0
    %759 = vmatprep.subr.mxu0 0.0
    %760 = vmatpush1.xpose.msra.mxu0 0.0
    %761 = vmatprep.subr.mxu0 0.0
    %762 = vmatpush1.xpose.msra.mxu0 0.0
    %763 = vmatprep.subr.mxu0 0.0
    %764 = vmatpush1.xpose.msra.mxu0 0.0
    %765 = vmatprep.subr.mxu0 0.0
    %766 = vmatpush1.xpose.msra.mxu0 0.0
    %767 = vmatprep.subr.mxu0 0.0
    %768 = vmatpush1.xpose.msra.mxu0 0.0
    %769 = vmatprep.subr.mxu0 0.0
    %770 = vmatpush1.xpose.msra.mxu0 0.0
    %771 = vmatprep.subr.mxu0 0.0
    %772 = vmatpush1.xpose.msra.mxu0 0.0
    %773 = vmatprep.subr.mxu0 0.0
    %774 = vmatpush1.xpose.msra.mxu0 0.0
    %775 = vmatprep.subr.mxu0 0.0
    %776 = vmatpush1.xpose.msra.mxu0 0.0
    %777 = vmatprep.subr.mxu0 0.0
    %778 = vmatpush1.xpose.msra.mxu0 0.0
    %779 = vmatprep.mubr.f32.mxu0 0.0
    %780 = vmatmul.mubr.f32.gmra.mrb[0].mxu0 %v707
    %v781 = vpop.f32.mrb[0].mxu0
    %v782 = vadd.f32 %v47, %v781
    %v783 = vpop.f32.mrb[0].mxu0
    %784 = vmatprep.mubr.f32.mxu0 0.0
    %785 = vmatmul.mubr.f32.gmra.mrb[0].mxu0 %v709
    %v786 = vpop.f32.mrb[0].mxu0
    %v787 = vadd.f32 %v48, %v786
    %v788 = vpop.f32.mrb[0].mxu0
    %789 = vdwg.mxu0
    %v790 = vsel %vm381, %v782, -inf
    %791 = vmax.xlane.f32.xlu0 %v790
    %v792 = vpop.xlane.xlu0 %791
    %v793 = vsel %vm381, %v787, -inf
    %794 = vmax.xlane.f32.xlu0 %v793
    %v795 = vpop.xlane.xlu0 %794
    %v796 = vsub.f32 %v782, %v792
    %v797 = vsub.f32 %v787, %v795
    %v798 = vmul.f32 %v796, 1.442695
    %v799 = vpow.pop %v798
    %v800 = vmul.f32 %v797, 1.442695
    %v801 = vpow.pop %v800
    %v802 = vsel %vm381, %v799, 0.0
    %803 = vadd.xlane.f32.xlu0 %v802
    %v804 = vpop.xlane.xlu0 %803
    %v805 = vsel %vm381, %v801, 0.0
    %806 = vadd.xlane.f32.xlu0 %v805
    %v807 = vpop.xlane.xlu0 %806
    %v808 = vrcp.pop %v804
    %v809 = vrcp.pop %v807
    %v810 = vmul.f32 %v804, %v808
    %v811 = vmul.f32 %v807, %v809
    %v812 = vsub.f32 2.0, %v810
    %v813 = vsub.f32 2.0, %v811
    %v814 = vmul.f32 %v808, %v812
    %v815 = vmul.f32 %v809, %v813
    %v816 = vmul.f32 %v799, %v814
    %v817 = vmul.f32 %v801, %v815
    %818 = vrot.lane.b32.xlu0 %v285, 64
    %v819 = vpop.permute.xlu0 %818
    %820 = vrot.lane.b32.xlu0 %v290, 64
    %v821 = vpop.permute.xlu0 %820
    %v825 = vsel %vm381, %v816, 0
    %v828 = vsel %vm381, %v817, 0
    %830 = vmatprep.subr.mxu0 0.0
    %831 = vmatpush1.msra.mxu0 %v819
    %832 = vmatprep.subr.mxu0 0.0
    %833 = vmatpush1.msra.mxu0 %v821
    %834 = vmatprep.subr.mxu0 0.0
    %835 = vmatpush1.msra.mxu0 0.0
    %836 = vmatprep.subr.mxu0 0.0
    %837 = vmatpush1.msra.mxu0 0.0
    %838 = vmatprep.subr.mxu0 0.0
    %839 = vmatpush1.msra.mxu0 0.0
    %840 = vmatprep.subr.mxu0 0.0
    %841 = vmatpush1.msra.mxu0 0.0
    %842 = vmatprep.subr.mxu0 0.0
    %843 = vmatpush1.msra.mxu0 0.0
    %844 = vmatprep.subr.mxu0 0.0
    %845 = vmatpush1.msra.mxu0 0.0
    %846 = vmatprep.subr.mxu0 0.0
    %847 = vmatpush1.msra.mxu0 0.0
    %848 = vmatprep.subr.mxu0 0.0
    %849 = vmatpush1.msra.mxu0 0.0
    %850 = vmatprep.subr.mxu0 0.0
    %851 = vmatpush1.msra.mxu0 0.0
    %852 = vmatprep.subr.mxu0 0.0
    %853 = vmatpush1.msra.mxu0 0.0
    %854 = vmatprep.subr.mxu0 0.0
    %855 = vmatpush1.msra.mxu0 0.0
    %856 = vmatprep.subr.mxu0 0.0
    %857 = vmatpush1.msra.mxu0 0.0
    %858 = vmatprep.subr.mxu0 0.0
    %859 = vmatpush1.msra.mxu0 0.0
    %860 = vmatprep.subr.mxu0 0.0
    %861 = vmatpush1.msra.mxu0 0.0
    %862 = vmatprep.subr.mxu0 0.0
    %863 = vmatpush1.msra.mxu0 0.0
    %864 = vmatprep.subr.mxu0 0.0
    %865 = vmatpush1.msra.mxu0 0.0
    %866 = vmatprep.subr.mxu0 0.0
    %867 = vmatpush1.msra.mxu0 0.0
    %868 = vmatprep.subr.mxu0 0.0
    %869 = vmatpush1.msra.mxu0 0.0
    %870 = vmatprep.subr.mxu0 0.0
    %871 = vmatpush1.msra.mxu0 0.0
    %872 = vmatprep.subr.mxu0 0.0
    %873 = vmatpush1.msra.mxu0 0.0
    %874 = vmatprep.subr.mxu0 0.0
    %875 = vmatpush1.msra.mxu0 0.0
    %876 = vmatprep.subr.mxu0 0.0
    %877 = vmatpush1.msra.mxu0 0.0
    %878 = vmatprep.subr.mxu0 0.0
    %879 = vmatpush1.msra.mxu0 0.0
    %880 = vmatprep.subr.mxu0 0.0
    %881 = vmatpush1.msra.mxu0 0.0
    %882 = vmatprep.subr.mxu0 0.0
    %883 = vmatpush1.msra.mxu0 0.0
    %884 = vmatprep.subr.mxu0 0.0
    %885 = vmatpush1.msra.mxu0 0.0
    %886 = vmatprep.subr.mxu0 0.0
    %887 = vmatpush1.msra.mxu0 0.0
    %888 = vmatprep.subr.mxu0 0.0
    %889 = vmatpush1.msra.mxu0 0.0
    %890 = vmatprep.subr.mxu0 0.0
    %891 = vmatpush1.msra.mxu0 0.0
    %892 = vmatprep.subr.mxu0 0.0
    %893 = vmatpush1.msra.mxu0 0.0
    %894 = vmatprep.mubr.f32.mxu0 0.0
    %895 = vmatmul.mubr.f32.gmra.mrb[0].mxu0 %v825
    %v896 = vpop.f32.mrb[0].mxu0
    %v897 = vadd.f32 0.0, %v896
    %v898 = vpop.f32.mrb[0].mxu0
    %899 = vmatprep.mubr.f32.mxu0 0.0
    %900 = vmatmul.mubr.f32.gmra.mrb[0].mxu0 %v828
    %v901 = vpop.f32.mrb[0].mxu0
    %v902 = vadd.f32 0.0, %v901
    %v903 = vpop.f32.mrb[0].mxu0
    %904 = vdwg.mxu0
    %v905 = vadd.f32 %v691, %v897
    %v906 = vadd.f32 %v696, %v902
    %907 = vrot.lane.b32.xlu0 %v127, 104
    %v908 = vpop.permute.xlu0 %907
    %909 = vrot.lane.b32.xlu0 %v132, 104
    %v910 = vpop.permute.xlu0 %909
    %911 = vrot.lane.b32.xlu0 %v206, 104
    %v912 = vpop.permute.xlu0 %911
    %913 = vrot.lane.b32.xlu0 %v211, 104
    %v914 = vpop.permute.xlu0 %913
    %v915 = vsel %vm293, %v908, 0
    %v917 = vsel %vm293, %v910, 0
    %v919 = vsel %vm293, %v912, 0
    %v921 = vsel %vm293, %v914, 0
    %923 = vmatprep.subr.mxu0 0.0
    %924 = vmatpush1.xpose.msra.mxu0 %v919
    %925 = vmatprep.subr.mxu0 0.0
    %926 = vmatpush1.xpose.msra.mxu0 %v921
    %927 = vmatprep.subr.mxu0 0.0
    %928 = vmatpush1.xpose.msra.mxu0 0.0
    %929 = vmatprep.subr.mxu0 0.0
    %930 = vmatpush1.xpose.msra.mxu0 0.0
    %931 = vmatprep.subr.mxu0 0.0
    %932 = vmatpush1.xpose.msra.mxu0 0.0
    %933 = vmatprep.subr.mxu0 0.0
    %934 = vmatpush1.xpose.msra.mxu0 0.0
    %935 = vmatprep.subr.mxu0 0.0
    %936 = vmatpush1.xpose.msra.mxu0 0.0
    %937 = vmatprep.subr.mxu0 0.0
    %938 = vmatpush1.xpose.msra.mxu0 0.0
    %939 = vmatprep.subr.mxu0 0.0
    %940 = vmatpush1.xpose.msra.mxu0 0.0
    %941 = vmatprep.subr.mxu0 0.0
    %942 = vmatpush1.xpose.msra.mxu0 0.0
    %943 = vmatprep.subr.mxu0 0.0
    %944 = vmatpush1.xpose.msra.mxu0 0.0
    %945 = vmatprep.subr.mxu0 0.0
    %946 = vmatpush1.xpose.msra.mxu0 0.0
    %947 = vmatprep.subr.mxu0 0.0
    %948 = vmatpush1.xpose.msra.mxu0 0.0
    %949 = vmatprep.subr.mxu0 0.0
    %950 = vmatpush1.xpose.msra.mxu0 0.0
    %951 = vmatprep.subr.mxu0 0.0
    %952 = vmatpush1.xpose.msra.mxu0 0.0
    %953 = vmatprep.subr.mxu0 0.0
    %954 = vmatpush1.xpose.msra.mxu0 0.0
    %955 = vmatprep.subr.mxu0 0.0
    %956 = vmatpush1.xpose.msra.mxu0 0.0
    %957 = vmatprep.subr.mxu0 0.0
    %958 = vmatpush1.xpose.msra.mxu0 0.0
    %959 = vmatprep.subr.mxu0 0.0
    %960 = vmatpush1.xpose.msra.mxu0 0.0
    %961 = vmatprep.subr.mxu0 0.0
    %962 = vmatpush1.xpose.msra.mxu0 0.0
    %963 = vmatprep.subr.mxu0 0.0
    %964 = vmatpush1.xpose.msra.mxu0 0.0
    %965 = vmatprep.subr.mxu0 0.0
    %966 = vmatpush1.xpose.msra.mxu0 0.0
    %967 = vmatprep.subr.mxu0 0.0
    %968 = vmatpush1.xpose.msra.mxu0 0.0
    %969 = vmatprep.subr.mxu0 0.0
    %970 = vmatpush1.xpose.msra.mxu0 0.0
    %971 = vmatprep.subr.mxu0 0.0
    %972 = vmatpush1.xpose.msra.mxu0 0.0
    %973 = vmatprep.subr.mxu0 0.0
    %974 = vmatpush1.xpose.msra.mxu0 0.0
    %975 = vmatprep.subr.mxu0 0.0
    %976 = vmatpush1.xpose.msra.mxu0 0.0
    %977 = vmatprep.subr.mxu0 0.0
    %978 = vmatpush1.xpose.msra.mxu0 0.0
    %979 = vmatprep.subr.mxu0 0.0
    %980 = vmatpush1.xpose.msra.mxu0 0.0
    %981 = vmatprep.subr.mxu0 0.0
    %982 = vmatpush1.xpose.msra.mxu0 0.0
    %983 = vmatprep.subr.mxu0 0.0
    %984 = vmatpush1.xpose.msra.mxu0 0.0
    %985 = vmatprep.subr.mxu0 0.0
    %986 = vmatpush1.xpose.msra.mxu0 0.0
    %987 = vmatprep.mubr.f32.mxu0 0.0
    %988 = vmatmul.mubr.f32.gmra.mrb[0].mxu0 %v915
    %v989 = vpop.f32.mrb[0].mxu0
    %v990 = vadd.f32 %v47, %v989
    %v991 = vpop.f32.mrb[0].mxu0
    %992 = vmatprep.mubr.f32.mxu0 0.0
    %993 = vmatmul.mubr.f32.gmra.mrb[0].mxu0 %v917
    %v994 = vpop.f32.mrb[0].mxu0
    %v995 = vadd.f32 %v48, %v994
    %v996 = vpop.f32.mrb[0].mxu0
    %997 = vdwg.mxu0
    %v998 = vsel %vm381, %v990, -inf
    %999 = vmax.xlane.f32.xlu0 %v998
    %v1000 = vpop.xlane.xlu0 %999
    %v1001 = vsel %vm381, %v995, -inf
    %1002 = vmax.xlane.f32.xlu0 %v1001
    %v1003 = vpop.xlane.xlu0 %1002
    %v1004 = vsub.f32 %v990, %v1000
    %v1005 = vsub.f32 %v995, %v1003
    %v1006 = vmul.f32 %v1004, 1.442695
    %v1007 = vpow.pop %v1006
    %v1008 = vmul.f32 %v1005, 1.442695
    %v1009 = vpow.pop %v1008
    %v1010 = vsel %vm381, %v1007, 0.0
    %1011 = vadd.xlane.f32.xlu0 %v1010
    %v1012 = vpop.xlane.xlu0 %1011
    %v1013 = vsel %vm381, %v1009, 0.0
    %1014 = vadd.xlane.f32.xlu0 %v1013
    %v1015 = vpop.xlane.xlu0 %1014
    %v1016 = vrcp.pop %v1012
    %v1017 = vrcp.pop %v1015
    %v1018 = vmul.f32 %v1012, %v1016
    %v1019 = vmul.f32 %v1015, %v1017
    %v1020 = vsub.f32 2.0, %v1018
    %v1021 = vsub.f32 2.0, %v1019
    %v1022 = vmul.f32 %v1016, %v1020
    %v1023 = vmul.f32 %v1017, %v1021
    %v1024 = vmul.f32 %v1007, %v1022
    %v1025 = vmul.f32 %v1009, %v1023
    %1026 = vrot.lane.b32.xlu0 %v285, 32
    %v1027 = vpop.permute.xlu0 %1026
    %1028 = vrot.lane.b32.xlu0 %v290, 32
    %v1029 = vpop.permute.xlu0 %1028
    %v1033 = vsel %vm381, %v1024, 0
    %v1036 = vsel %vm381, %v1025, 0
    %1038 = vmatprep.subr.mxu0 0.0
    %1039 = vmatpush1.msra.mxu0 %v1027
    %1040 = vmatprep.subr.mxu0 0.0
    %1041 = vmatpush1.msra.mxu0 %v1029
    %1042 = vmatprep.subr.mxu0 0.0
    %1043 = vmatpush1.msra.mxu0 0.0
    %1044 = vmatprep.subr.mxu0 0.0
    %1045 = vmatpush1.msra.mxu0 0.0
    %1046 = vmatprep.subr.mxu0 0.0
    %1047 = vmatpush1.msra.mxu0 0.0
    %1048 = vmatprep.subr.mxu0 0.0
    %1049 = vmatpush1.msra.mxu0 0.0
    %1050 = vmatprep.subr.mxu0 0.0
    %1051 = vmatpush1.msra.mxu0 0.0
    %1052 = vmatprep.subr.mxu0 0.0
    %1053 = vmatpush1.msra.mxu0 0.0
    %1054 = vmatprep.subr.mxu0 0.0
    %1055 = vmatpush1.msra.mxu0 0.0
    %1056 = vmatprep.subr.mxu0 0.0
    %1057 = vmatpush1.msra.mxu0 0.0
    %1058 = vmatprep.subr.mxu0 0.0
    %1059 = vmatpush1.msra.mxu0 0.0
    %1060 = vmatprep.subr.mxu0 0.0
    %1061 = vmatpush1.msra.mxu0 0.0
    %1062 = vmatprep.subr.mxu0 0.0
    %1063 = vmatpush1.msra.mxu0 0.0
    %1064 = vmatprep.subr.mxu0 0.0
    %1065 = vmatpush1.msra.mxu0 0.0
    %1066 = vmatprep.subr.mxu0 0.0
    %1067 = vmatpush1.msra.mxu0 0.0
    %1068 = vmatprep.subr.mxu0 0.0
    %1069 = vmatpush1.msra.mxu0 0.0
    %1070 = vmatprep.subr.mxu0 0.0
    %1071 = vmatpush1.msra.mxu0 0.0
    %1072 = vmatprep.subr.mxu0 0.0
    %1073 = vmatpush1.msra.mxu0 0.0
    %1074 = vmatprep.subr.mxu0 0.0
    %1075 = vmatpush1.msra.mxu0 0.0
    %1076 = vmatprep.subr.mxu0 0.0
    %1077 = vmatpush1.msra.mxu0 0.0
    %1078 = vmatprep.subr.mxu0 0.0
    %1079 = vmatpush1.msra.mxu0 0.0
    %1080 = vmatprep.subr.mxu0 0.0
    %1081 = vmatpush1.msra.mxu0 0.0
    %1082 = vmatprep.subr.mxu0 0.0
    %1083 = vmatpush1.msra.mxu0 0.0
    %1084 = vmatprep.subr.mxu0 0.0
    %1085 = vmatpush1.msra.mxu0 0.0
    %1086 = vmatprep.subr.mxu0 0.0
    %1087 = vmatpush1.msra.mxu0 0.0
    %1088 = vmatprep.subr.mxu0 0.0
    %1089 = vmatpush1.msra.mxu0 0.0
    %1090 = vmatprep.subr.mxu0 0.0
    %1091 = vmatpush1.msra.mxu0 0.0
    %1092 = vmatprep.subr.mxu0 0.0
    %1093 = vmatpush1.msra.mxu0 0.0
    %1094 = vmatprep.subr.mxu0 0.0
    %1095 = vmatpush1.msra.mxu0 0.0
    %1096 = vmatprep.subr.mxu0 0.0
    %1097 = vmatpush1.msra.mxu0 0.0
    %1098 = vmatprep.subr.mxu0 0.0
    %1099 = vmatpush1.msra.mxu0 0.0
    %1100 = vmatprep.subr.mxu0 0.0
    %1101 = vmatpush1.msra.mxu0 0.0
    %1102 = vmatprep.mubr.f32.mxu0 0.0
    %1103 = vmatmul.mubr.f32.gmra.mrb[0].mxu0 %v1033
    %v1104 = vpop.f32.mrb[0].mxu0
    %v1105 = vadd.f32 0.0, %v1104
    %v1106 = vpop.f32.mrb[0].mxu0
    %1107 = vmatprep.mubr.f32.mxu0 0.0
    %1108 = vmatmul.mubr.f32.gmra.mrb[0].mxu0 %v1036
    %v1109 = vpop.f32.mrb[0].mxu0
    %v1110 = vadd.f32 0.0, %v1109
    %v1111 = vpop.f32.mrb[0].mxu0
    %1112 = vdwg.mxu0
    %v1113 = vadd.f32 %v905, %v1105
    %v1114 = vadd.f32 %v906, %v1110
    %v1115 = vadd.f32 %v45, %v1113
    %v1116 = vadd.f32 %v46, %v1114
    %v1117 = vld [vmem:[%s9] sm:$0x1]
    %v1118 = vld [vmem:[%s10] sm:$0x1]
    %v1119 = vsel %vm53, %v1115, 0.0
    %1120 = vadd.xlane.f32.xlu0 %v1119
    %v1121 = vpop.xlane.xlu0 %1120
    %v1122 = vsel %vm53, %v1116, 0.0
    %1123 = vadd.xlane.f32.xlu0 %v1122
    %v1124 = vpop.xlane.xlu0 %1123
    %v1125 = vrcp.pop 32.0
    %v1126 = vmul.f32 %v1121, %v1125
    %v1127 = vmul.f32 %v1124, %v1125
    %v1128 = vmul.f32 %v1115, %v1115
    %v1129 = vmul.f32 %v1116, %v1116
    %v1130 = vsel %vm53, %v1128, 0.0
    %1131 = vadd.xlane.f32.xlu0 %v1130
    %v1132 = vpop.xlane.xlu0 %1131
    %v1133 = vsel %vm53, %v1129, 0.0
    %1134 = vadd.xlane.f32.xlu0 %v1133
    %v1135 = vpop.xlane.xlu0 %1134
    %v1136 = vmul.f32 %v1132, %v1125
    %v1137 = vmul.f32 %v1135, %v1125
    %v1138 = vmul.f32 %v1126, %v1126
    %v1139 = vmul.f32 %v1127, %v1127
    %v1140 = vsub.f32 %v1136, %v1138
    %v1141 = vsub.f32 %v1137, %v1139
    %v1142 = vadd.f32 %v1140, 1e-05
    %v1143 = vadd.f32 %v1141, 1e-05
    %v1144 = vrsqrt.pop %v1142
    %v1145 = vrsqrt.pop %v1143
    %v1146 = vsub.f32 %v1115, %v1126
    %v1147 = vsub.f32 %v1116, %v1127
    %v1149 = vlaneseq
    %v1150 = vshrl.u32 %v1149, 7
    %v1151 = vsub.s32 0, %v1150
    %v1152 = vrot.slane %v1117, %v1151
    %v1154 = vmul.f32 %v1144, %v1152
    %v1155 = vmul.f32 %v1145, %v1152
    %v1156 = vmul.f32 %v1146, %v1154
    %v1157 = vmul.f32 %v1147, %v1155
    %v1159 = vlaneseq
    %v1160 = vshrl.u32 %v1159, 7
    %v1161 = vsub.s32 0, %v1160
    %v1162 = vrot.slane %v1118, %v1161
    %v1164 = vadd.f32 %v1156, %v1162
    %v1165 = vadd.f32 %v1157, %v1162
    %v1166 = vld [vmem:[%s5] sm:$0xff]
    %v1167 = vld [vmem:[%s5 + $0x8] sm:$0xff]
    %v1168 = vld [vmem:[%s5 + $0x10] sm:$0xff]
    %v1169 = vld [vmem:[%s5 + $0x18] sm:$0xff]
    %v1170 = vld [vmem:[%s6] sm:$0x1]
    %v1172 = vlaneseq
    %v1173 = vshrl.u32 %v1172, 7
    %v1174 = vsub.s32 0, %v1173
    %v1175 = vrot.slane %v1170, %v1174
    %v1178 = vsel %vm53, %v1164, 0
    %v1181 = vsel %vm53, %v1165, 0
    %1183 = vmatprep.subr.mxu0 0.0
    %1184 = vmatpush1.msra.mxu0 %v1166
    %1185 = vmatprep.subr.mxu0 0.0
    %1186 = vmatpush1.msra.mxu0 %v1167
    %1187 = vmatprep.subr.mxu0 0.0
    %1188 = vmatpush1.msra.mxu0 %v1168
    %1189 = vmatprep.subr.mxu0 0.0
    %1190 = vmatpush1.msra.mxu0 %v1169
    %1191 = vmatprep.subr.mxu0 0.0
    %1192 = vmatpush1.msra.mxu0 0.0
    %1193 = vmatprep.subr.mxu0 0.0
    %1194 = vmatpush1.msra.mxu0 0.0
    %1195 = vmatprep.subr.mxu0 0.0
    %1196 = vmatpush1.msra.mxu0 0.0
    %1197 = vmatprep.subr.mxu0 0.0
    %1198 = vmatpush1.msra.mxu0 0.0
    %1199 = vmatprep.subr.mxu0 0.0
    %1200 = vmatpush1.msra.mxu0 0.0
    %1201 = vmatprep.subr.mxu0 0.0
    %1202 = vmatpush1.msra.mxu0 0.0
    %1203 = vmatprep.subr.mxu0 0.0
    %1204 = vmatpush1.msra.mxu0 0.0
    %1205 = vmatprep.subr.mxu0 0.0
    %1206 = vmatpush1.msra.mxu0 0.0
    %1207 = vmatprep.subr.mxu0 0.0
    %1208 = vmatpush1.msra.mxu0 0.0
    %1209 = vmatprep.subr.mxu0 0.0
    %1210 = vmatpush1.msra.mxu0 0.0
    %1211 = vmatprep.subr.mxu0 0.0
    %1212 = vmatpush1.msra.mxu0 0.0
    %1213 = vmatprep.subr.mxu0 0.0
    %1214 = vmatpush1.msra.mxu0 0.0
    %1215 = vmatprep.subr.mxu0 0.0
    %1216 = vmatpush1.msra.mxu0 0.0
    %1217 = vmatprep.subr.mxu0 0.0
    %1218 = vmatpush1.msra.mxu0 0.0
    %1219 = vmatprep.subr.mxu0 0.0
    %1220 = vmatpush1.msra.mxu0 0.0
    %1221 = vmatprep.subr.mxu0 0.0
    %1222 = vmatpush1.msra.mxu0 0.0
    %1223 = vmatprep.subr.mxu0 0.0
    %1224 = vmatpush1.msra.mxu0 0.0
    %1225 = vmatprep.subr.mxu0 0.0
    %1226 = vmatpush1.msra.mxu0 0.0
    %1227 = vmatprep.subr.mxu0 0.0
    %1228 = vmatpush1.msra.mxu0 0.0
    %1229 = vmatprep.subr.mxu0 0.0
    %1230 = vmatpush1.msra.mxu0 0.0
    %1231 = vmatprep.subr.mxu0 0.0
    %1232 = vmatpush1.msra.mxu0 0.0
    %1233 = vmatprep.subr.mxu0 0.0
    %1234 = vmatpush1.msra.mxu0 0.0
    %1235 = vmatprep.subr.mxu0 0.0
    %1236 = vmatpush1.msra.mxu0 0.0
    %1237 = vmatprep.subr.mxu0 0.0
    %1238 = vmatpush1.msra.mxu0 0.0
    %1239 = vmatprep.subr.mxu0 0.0
    %1240 = vmatpush1.msra.mxu0 0.0
    %1241 = vmatprep.subr.mxu0 0.0
    %1242 = vmatpush1.msra.mxu0 0.0
    %1243 = vmatprep.subr.mxu0 0.0
    %1244 = vmatpush1.msra.mxu0 0.0
    %1245 = vmatprep.subr.mxu0 0.0
    %1246 = vmatpush1.msra.mxu0 0.0
    %1247 = vmatprep.mubr.f32.mxu0 0.0
    %1248 = vmatmul.mubr.f32.gmra.mrb[0].mxu0 %v1178
    %v1249 = vpop.f32.mrb[0].mxu0
    %v1250 = vadd.f32 %v1175, %v1249
    %v1251 = vpop.f32.mrb[0].mxu0
    %1252 = vmatprep.mubr.f32.mxu0 0.0
    %1253 = vmatmul.mubr.f32.gmra.mrb[0].mxu0 %v1181
    %v1254 = vpop.f32.mrb[0].mxu0
    %v1255 = vadd.f32 %v1175, %v1254
    %v1256 = vpop.f32.mrb[0].mxu0
    %1257 = vdwg.mxu0
    %v1258 = vmax.f32 %v1250, 0.0
    %v1259 = vmax.f32 %v1255, 0.0
    %v1260 = vld [vmem:[%s7] sm:$0xff]
    %v1261 = vld [vmem:[%s7 + $0x8] sm:$0xff]
    %v1262 = vld [vmem:[%s7 + $0x10] sm:$0xff]
    %v1263 = vld [vmem:[%s7 + $0x18] sm:$0xff]
    %v1264 = vld [vmem:[%s7 + $0x20] sm:$0xff]
    %v1265 = vld [vmem:[%s7 + $0x28] sm:$0xff]
    %v1266 = vld [vmem:[%s7 + $0x30] sm:$0xff]
    %v1267 = vld [vmem:[%s7 + $0x38] sm:$0xff]
    %v1268 = vld [vmem:[%s7 + $0x40] sm:$0xff]
    %v1269 = vld [vmem:[%s7 + $0x48] sm:$0xff]
    %v1270 = vld [vmem:[%s7 + $0x50] sm:$0xff]
    %v1271 = vld [vmem:[%s7 + $0x58] sm:$0xff]
    %v1272 = vld [vmem:[%s7 + $0x60] sm:$0xff]
    %v1273 = vld [vmem:[%s7 + $0x68] sm:$0xff]
    %v1274 = vld [vmem:[%s7 + $0x70] sm:$0xff]
    %v1275 = vld [vmem:[%s7 + $0x78] sm:$0xff]
    %v1276 = vld [vmem:[%s8] sm:$0x1]
    %v1278 = vlaneseq
    %v1279 = vshrl.u32 %v1278, 7
    %v1280 = vsub.s32 0, %v1279
    %v1281 = vrot.slane %v1276, %v1280
    %1283 = vmatprep.subr.mxu0 0.0
    %1284 = vmatpush1.msra.mxu0 %v1260
    %1285 = vmatprep.subr.mxu0 0.0
    %1286 = vmatpush1.msra.mxu0 %v1261
    %1287 = vmatprep.subr.mxu0 0.0
    %1288 = vmatpush1.msra.mxu0 %v1262
    %1289 = vmatprep.subr.mxu0 0.0
    %1290 = vmatpush1.msra.mxu0 %v1263
    %1291 = vmatprep.subr.mxu0 0.0
    %1292 = vmatpush1.msra.mxu0 %v1264
    %1293 = vmatprep.subr.mxu0 0.0
    %1294 = vmatpush1.msra.mxu0 %v1265
    %1295 = vmatprep.subr.mxu0 0.0
    %1296 = vmatpush1.msra.mxu0 %v1266
    %1297 = vmatprep.subr.mxu0 0.0
    %1298 = vmatpush1.msra.mxu0 %v1267
    %1299 = vmatprep.subr.mxu0 0.0
    %1300 = vmatpush1.msra.mxu0 %v1268
    %1301 = vmatprep.subr.mxu0 0.0
    %1302 = vmatpush1.msra.mxu0 %v1269
    %1303 = vmatprep.subr.mxu0 0.0
    %1304 = vmatpush1.msra.mxu0 %v1270
    %1305 = vmatprep.subr.mxu0 0.0
    %1306 = vmatpush1.msra.mxu0 %v1271
    %1307 = vmatprep.subr.mxu0 0.0
    %1308 = vmatpush1.msra.mxu0 %v1272
    %1309 = vmatprep.subr.mxu0 0.0
    %1310 = vmatpush1.msra.mxu0 %v1273
    %1311 = vmatprep.subr.mxu0 0.0
    %1312 = vmatpush1.msra.mxu0 %v1274
    %1313 = vmatprep.subr.mxu0 0.0
    %1314 = vmatpush1.msra.mxu0 %v1275
    %1315 = vmatprep.subr.mxu0 0.0
    %1316 = vmatpush1.msra.mxu0 0.0
    %1317 = vmatprep.subr.mxu0 0.0
    %1318 = vmatpush1.msra.mxu0 0.0
    %1319 = vmatprep.subr.mxu0 0.0
    %1320 = vmatpush1.msra.mxu0 0.0
    %1321 = vmatprep.subr.mxu0 0.0
    %1322 = vmatpush1.msra.mxu0 0.0
    %1323 = vmatprep.subr.mxu0 0.0
    %1324 = vmatpush1.msra.mxu0 0.0
    %1325 = vmatprep.subr.mxu0 0.0
    %1326 = vmatpush1.msra.mxu0 0.0
    %1327 = vmatprep.subr.mxu0 0.0
    %1328 = vmatpush1.msra.mxu0 0.0
    %1329 = vmatprep.subr.mxu0 0.0
    %1330 = vmatpush1.msra.mxu0 0.0
    %1331 = vmatprep.subr.mxu0 0.0
    %1332 = vmatpush1.msra.mxu0 0.0
    %1333 = vmatprep.subr.mxu0 0.0
    %1334 = vmatpush1.msra.mxu0 0.0
    %1335 = vmatprep.subr.mxu0 0.0
    %1336 = vmatpush1.msra.mxu0 0.0
    %1337 = vmatprep.subr.mxu0 0.0
    %1338 = vmatpush1.msra.mxu0 0.0
    %1339 = vmatprep.subr.mxu0 0.0
    %1340 = vmatpush1.msra.mxu0 0.0
    %1341 = vmatprep.subr.mxu0 0.0
    %1342 = vmatpush1.msra.mxu0 0.0
    %1343 = vmatprep.subr.mxu0 0.0
    %1344 = vmatpush1.msra.mxu0 0.0
    %1345 = vmatprep.subr.mxu0 0.0
    %1346 = vmatpush1.msra.mxu0 0.0
    %1347 = vmatprep.mubr.f32.mxu0 0.0
    %1348 = vmatmul.mubr.f32.gmra.mrb[0].mxu0 %v1258
    %v1349 = vpop.f32.mrb[0].mxu0
    %v1350 = vadd.f32 %v1281, %v1349
    %v1351 = vpop.f32.mrb[0].mxu0
    %1352 = vmatprep.mubr.f32.mxu0 0.0
    %1353 = vmatmul.mubr.f32.gmra.mrb[0].mxu0 %v1259
    %v1354 = vpop.f32.mrb[0].mxu0
    %v1355 = vadd.f32 %v1281, %v1354
    %v1356 = vpop.f32.mrb[0].mxu0
    %1357 = vdwg.mxu0
    %v1358 = vadd.f32 %v1164, %v1350
    %v1359 = vadd.f32 %v1165, %v1355
    %v1360 = vld [vmem:[%s11] sm:$0x1]
    %v1361 = vld [vmem:[%s12] sm:$0x1]
    %v1362 = vsel %vm53, %v1358, 0.0
    %1363 = vadd.xlane.f32.xlu0 %v1362
    %v1364 = vpop.xlane.xlu0 %1363
    %v1365 = vsel %vm53, %v1359, 0.0
    %1366 = vadd.xlane.f32.xlu0 %v1365
    %v1367 = vpop.xlane.xlu0 %1366
    %v1368 = vmul.f32 %v1364, %v1125
    %v1369 = vmul.f32 %v1367, %v1125
    %v1370 = vmul.f32 %v1358, %v1358
    %v1371 = vmul.f32 %v1359, %v1359
    %v1372 = vsel %vm53, %v1370, 0.0
    %1373 = vadd.xlane.f32.xlu0 %v1372
    %v1374 = vpop.xlane.xlu0 %1373
    %v1375 = vsel %vm53, %v1371, 0.0
    %1376 = vadd.xlane.f32.xlu0 %v1375
    %v1377 = vpop.xlane.xlu0 %1376
    %v1378 = vmul.f32 %v1374, %v1125
    %v1379 = vmul.f32 %v1377, %v1125
    %v1380 = vmul.f32 %v1368, %v1368
    %v1381 = vmul.f32 %v1369, %v1369
    %v1382 = vsub.f32 %v1378, %v1380
    %v1383 = vsub.f32 %v1379, %v1381
    %v1384 = vadd.f32 %v1382, 1e-05
    %v1385 = vadd.f32 %v1383, 1e-05
    %v1386 = vrsqrt.pop %v1384
    %v1387 = vrsqrt.pop %v1385
    %v1388 = vsub.f32 %v1358, %v1368
    %v1389 = vsub.f32 %v1359, %v1369
    %v1391 = vlaneseq
    %v1392 = vshrl.u32 %v1391, 7
    %v1393 = vsub.s32 0, %v1392
    %v1394 = vrot.slane %v1360, %v1393
    %v1396 = vmul.f32 %v1386, %v1394
    %v1397 = vmul.f32 %v1387, %v1394
    %v1398 = vmul.f32 %v1388, %v1396
    %v1399 = vmul.f32 %v1389, %v1397
    %v1401 = vlaneseq
    %v1402 = vshrl.u32 %v1401, 7
    %v1403 = vsub.s32 0, %v1402
    %v1404 = vrot.slane %v1361, %v1403
    %v1406 = vadd.f32 %v1398, %v1404
    %v1407 = vadd.f32 %v1399, %v1404
    %1408 = vst.msk [vmem:[#allocation2] sm:$0xff] %vm53, %v1406
    %1409 = vst.msk [vmem:[#allocation2 + $0x8] sm:$0xff] %vm53, %v1407
    // Predicated region
    $region54: #{tpu_custom_call.1} parent=1 // pred_check
      _
    $region55: #{tpu_custom_call.1} parent=1 // pred_check_branch
      %1411 = sbr.rel (0) target = $region57
    $region56: #{tpu_custom_call.1} parent=1 // pred_region
      %s1413 = ssub.s32 256, 256
      %1414 = vsyncadd [#allocation3], %s1413
      %s1415 = sshll.u32 [#allocation2], 4
      %s1416 = int_to_ptr.vmem [resolvable:$true] %s1415
      %1421 = dma.vmem_to_hbm [thread:$0]  %s1416, 256, %s13, [#allocation3], 128, 128, 8
    $region57: #{tpu_custom_call.1} parent=1 // pred_fallthru
      _
    // Predicated region
    $region58: #{tpu_custom_call.1} parent=1 // pred_check
      _
    $region59: #{tpu_custom_call.1} parent=1 // pred_check_branch
      %1423 = sbr.rel (0) target = $region61
    $region60: #{tpu_custom_call.1} parent=1 // pred_region
      %1424 = dma.done [#allocation3], 256
    $region61: #{tpu_custom_call.1} parent=1 // pred_fallthru
      _
    %1425 = vsyncpa [#allocation3], 1

</llo_original>
